<compile_context>
chip_gen: v7x
topology: tpu7x:2x2x1
jax: 0.10.0
libtpu: 0.0.40
codegen_flags: <defaults>
</compile_context>

<pallas_src>
import functools

import jax
import jax.numpy as jnp
from jax import lax
from jax.experimental import pallas as pl
from jax.experimental.pallas import tpu as pltpu

BN_EPS = 1e-5
LANE = 128                      # channel / contraction axes padded to this
SUBLANE = 8
TM_GRAIN = 16                   # bf16 sublane packing -> keep M tiles /16
MAX_TM = 2048
VMEM_BUDGET = 20 * 1024 * 1024  # per-call working-set target (v7x 64 MiB safe)
VMEM_LIMIT = 48 * 1024 * 1024


def _round_up(x, m):
    return (x + m - 1) // m * m


def _compiler_params():
    return pltpu.CompilerParams(
        dimension_semantics=("parallel",),
        vmem_limit_bytes=VMEM_LIMIT)


def _choose_tm(m, kp, cpt):
    """Pick an M-tile so the double-buffered conv+stats working set stays
    under VMEM_BUDGET: 2x taps(bf16) + 2x y(bf16) + f32 accumulator per row,
    plus the double-buffered weight tile and stats blocks."""
    fixed = 2 * kp * cpt * 2 + 4 * SUBLANE * cpt * 4
    per_row = 2 * kp * 2 + 2 * cpt * 2 + cpt * 4
    tm = (VMEM_BUDGET - fixed) // max(per_row, 1)
    tm = max(TM_GRAIN, min(MAX_TM, tm))
    tm = (tm // TM_GRAIN) * TM_GRAIN
    tm = min(tm, _round_up(m, TM_GRAIN))
    return max(tm, TM_GRAIN)


# ---------------------------------------------------------------------------
# Pallas kernels
# ---------------------------------------------------------------------------
def _conv_stats_kernel(taps_ref, w_ref, y_ref, part_ref):
    """Pass 1: single MXU matmul (bf16 operands, f32 acc); emit the conv
    output in bf16 (halves HBM write) and per-tile partial BatchNorm
    statistics (sum, sum of squares) taken from the f32 accumulator."""
    acc = jnp.dot(taps_ref[...], w_ref[...],
                  preferred_element_type=jnp.float32)          # [TM, Cpt] f32
    y_ref[...] = acc.astype(y_ref.dtype)                       # bf16 store
    s = jnp.sum(acc, axis=0, keepdims=True)                    # [1, Cpt]
    ss = jnp.sum(acc * acc, axis=0, keepdims=True)             # [1, Cpt]
    row = lax.broadcasted_iota(jnp.int32, (SUBLANE, acc.shape[1]), 0)
    part_ref[...] = (jnp.where(row == 0, s, 0.0) +
                     jnp.where(row == 1, ss, 0.0))


def _scale_shift(stats, gamma, beta, inv_count, eps):
    """Finalize training-mode BN from (sum, sum_sq) rows -> per-channel
    scale/shift (f32).  Conv bias omitted: cancelled by mean subtraction."""
    mean = stats[0:1, :] * inv_count
    var = jnp.maximum(stats[1:2, :] * inv_count - mean * mean, 0.0)
    scale = gamma * lax.rsqrt(var + eps)
    shift = beta - mean * scale
    return scale, shift


def _bn_act_kernel(y_ref, st_ref, g_ref, b_ref, o_ref, *, inv_count, eps, relu):
    """Pass 2: BN apply (+ optional ReLU); bf16 in / bf16 out, f32 math."""
    scale, shift = _scale_shift(st_ref[...], g_ref[...], b_ref[...],
                                inv_count, eps)
    out = y_ref[...].astype(jnp.float32) * scale + shift
    if relu:
        out = jnp.maximum(out, 0.0)
    o_ref[...] = out.astype(o_ref.dtype)


def _bn_add_relu_kernel(y_ref, st_ref, g_ref, b_ref, sc_ref, o_ref, *,
                        inv_count, eps):
    """Pass 2 (identity shortcut): BN(conv2) + raw shortcut + ReLU."""
    scale, shift = _scale_shift(st_ref[...], g_ref[...], b_ref[...],
                                inv_count, eps)
    out = (y_ref[...].astype(jnp.float32) * scale + shift
           + sc_ref[...].astype(jnp.float32))
    o_ref[...] = jnp.maximum(out, 0.0).astype(o_ref.dtype)


def _bn2_add_relu_kernel(y_ref, st_ref, g_ref, b_ref,
                         ys_ref, sts_ref, gs_ref, bs_ref, o_ref, *,
                         inv_count, eps):
    """Pass 2 (projection shortcut): BN(conv2) + BN(1x1 shortcut conv) +
    residual add + ReLU, fused in a single pass over M tiles."""
    sc2, sh2 = _scale_shift(st_ref[...], g_ref[...], b_ref[...],
                            inv_count, eps)
    scs, shs = _scale_shift(sts_ref[...], gs_ref[...], bs_ref[...],
                            inv_count, eps)
    out = ((y_ref[...].astype(jnp.float32) * sc2 + sh2) +
           (ys_ref[...].astype(jnp.float32) * scs + shs))
    o_ref[...] = jnp.maximum(out, 0.0).astype(o_ref.dtype)


# ---------------------------------------------------------------------------
# pallas_call wrappers
# ---------------------------------------------------------------------------
def _row_spec(tm, c, col=0):              # M-tiled block, one lane column-block
    return pl.BlockSpec((tm, c), lambda i, _c=col: (i, _c))


def _bcast_spec(rows, c):                 # same block every grid step
    return pl.BlockSpec((rows, c), lambda i: (0, 0))


def conv_stats_pallas(taps, w, *, tm):
    """taps [Mp, Kp] bf16, w [Kp, Cpt] bf16 -> (y [Mp, Cpt] bf16,
    stats [8, Cpt] f32: row0 = sum, row1 = sum_sq over M)."""
    mp, kp = taps.shape
    cpt = w.shape[1]
    nt = mp // tm
    y, part = pl.pallas_call(
        _conv_stats_kernel,
        grid=(nt,),
        in_specs=[_row_spec(tm, kp), _bcast_spec(kp, cpt)],
        out_specs=(_row_spec(tm, cpt),
                   pl.BlockSpec((SUBLANE, cpt), lambda i: (i, 0))),
        out_shape=(jax.ShapeDtypeStruct((mp, cpt), jnp.bfloat16),
                   jax.ShapeDtypeStruct((nt * SUBLANE, cpt), jnp.float32)),
        compiler_params=_compiler_params(),
    )(taps, w)
    # tiny glue: combine per-tile partials (row 0 = sum, row 1 = sum_sq)
    stats = part.reshape(nt, SUBLANE, cpt).sum(axis=0)
    return y, stats


def bn_act_pallas(y, stats, gamma, beta, *, count, relu, tm, cp, y_col=0):
    mp = y.shape[0]
    kern = functools.partial(_bn_act_kernel, inv_count=1.0 / count,
                             eps=BN_EPS, relu=relu)
    return pl.pallas_call(
        kern, grid=(mp // tm,),
        in_specs=[_row_spec(tm, cp, y_col), _bcast_spec(SUBLANE, cp),
                  _bcast_spec(1, cp), _bcast_spec(1, cp)],
        out_specs=_row_spec(tm, cp),
        out_shape=jax.ShapeDtypeStruct((mp, cp), jnp.bfloat16),
        compiler_params=_compiler_params(),
    )(y, stats, gamma, beta)


def bn_add_relu_pallas(y, stats, gamma, beta, sc, *, count, tm, cp):
    mp = y.shape[0]
    kern = functools.partial(_bn_add_relu_kernel, inv_count=1.0 / count,
                             eps=BN_EPS)
    return pl.pallas_call(
        kern, grid=(mp // tm,),
        in_specs=[_row_spec(tm, cp), _bcast_spec(SUBLANE, cp),
                  _bcast_spec(1, cp), _bcast_spec(1, cp), _row_spec(tm, cp)],
        out_specs=_row_spec(tm, cp),
        out_shape=jax.ShapeDtypeStruct((mp, cp), jnp.float32),
        compiler_params=_compiler_params(),
    )(y, stats, gamma, beta, sc)


def bn2_add_relu_pallas(y, stats, gamma, beta, ys, stats_s, gs, bs, *,
                        count, tm, cp, ys_col=0):
    mp = y.shape[0]
    kern = functools.partial(_bn2_add_relu_kernel, inv_count=1.0 / count,
                             eps=BN_EPS)
    return pl.pallas_call(
        kern, grid=(mp // tm,),
        in_specs=[_row_spec(tm, cp), _bcast_spec(SUBLANE, cp),
                  _bcast_spec(1, cp), _bcast_spec(1, cp),
                  _row_spec(tm, cp, ys_col), _bcast_spec(SUBLANE, cp),
                  _bcast_spec(1, cp), _bcast_spec(1, cp)],
        out_specs=_row_spec(tm, cp),
        out_shape=jax.ShapeDtypeStruct((mp, cp), jnp.float32),
        compiler_params=_compiler_params(),
    )(y, stats, gamma, beta, ys, stats_s, gs, bs)


# ---------------------------------------------------------------------------
# Glue: packed im2col (pure data rearrangement) and weight packing
# ---------------------------------------------------------------------------
def extract_taps_packed(x_nhwc, ksize, stride, padding, mp, kp):
    """Packed im2col taps [Mp, Kp] bf16, K = ks*ks*C on the lane axis
    (column order: kh, kw, channel — matches _pack_conv_weight)."""
    n, h, w, c = x_nhwc.shape
    ho = (h + 2 * padding - ksize) // stride + 1
    wo = (w + 2 * padding - ksize) // stride + 1
    xp = jnp.pad(x_nhwc, ((0, 0), (padding, padding), (padding, padding),
                          (0, 0)))
    cols = []
    for kh in range(ksize):
        for kw in range(ksize):
            t = xp[:, kh:kh + (ho - 1) * stride + 1:stride,
                      kw:kw + (wo - 1) * stride + 1:stride, :]
            cols.append(t.reshape(n * ho * wo, c))
    packed = jnp.concatenate(cols, axis=-1)                    # [M, ks*ks*C]
    m, k = packed.shape
    packed = jnp.pad(packed, ((0, mp - m), (0, kp - k)))
    return packed.astype(jnp.bfloat16)


def _pack_conv_weight(w_pt, kp, cp):
    """[Cout, Cin, kh, kw] -> zero-padded f32 [Kp, Cp] (rows: kh, kw, cin)."""
    cout, cin, kh, kw = w_pt.shape
    w = jnp.transpose(w_pt, (2, 3, 1, 0)).reshape(kh * kw * cin, cout)
    return jnp.pad(w, ((0, kp - kh * kw * cin), (0, cp - cout)))


# ---------------------------------------------------------------------------
# ResidualBlock (parameters + forward)
# ---------------------------------------------------------------------------
class ResidualBlockPallas:
    def __init__(self, in_channels, out_channels, stride=1, key=None,
                 fold_projection=True):
        self.in_channels = in_channels
        self.out_channels = out_channels
        self.stride = stride
        self.cp = _round_up(out_channels, LANE)
        self.k1p = _round_up(9 * in_channels, LANE)
        self.k2p = _round_up(9 * out_channels, LANE)
        self.projection = (stride != 1) or (in_channels != out_channels)
        # fold_projection=False keeps a separate shortcut matmul (useful when
        # the layer is MXU-bound, e.g. big-C layers on v5e).
        self.fold_projection = bool(fold_projection) and self.projection

        key = jax.random.PRNGKey(42) if key is None else key
        k1, k2, k3, k4, k5, k6 = jax.random.split(key, 6)

        def affine():
            g = jnp.pad(jnp.ones((out_channels,), jnp.float32),
                        (0, self.cp - out_channels)).reshape(1, self.cp)
            b = jnp.zeros((1, self.cp), jnp.float32)
            return g, b

        # raw params (conv biases kept only for the f32 reference: they are
        # exactly cancelled by training-mode BN, so the kernels drop them)
        self.w1_pt = 0.1 * jax.random.normal(
            k1, (out_channels, in_channels, 3, 3), jnp.float32)
        self.b1 = 0.1 * jax.random.normal(k2, (out_channels,), jnp.float32)
        self.g1, self.beta1 = affine()

        self.w2_pt = 0.1 * jax.random.normal(
            k3, (out_channels, out_channels, 3, 3), jnp.float32)
        self.b2 = 0.1 * jax.random.normal(k4, (out_channels,), jnp.float32)
        self.g2, self.beta2 = affine()

        if self.projection:
            self.ws_pt = 0.1 * jax.random.normal(
                k5, (out_channels, in_channels, 1, 1), jnp.float32)
            self.bs = 0.1 * jax.random.normal(k6, (out_channels,), jnp.float32)
            self.gs, self.betas = affine()

        # packed kernels weights (bf16, lane-padded)
        w1_packed = _pack_conv_weight(self.w1_pt, self.k1p, self.cp)
        if self.fold_projection:
            # Fold the 1x1 shortcut conv into conv1: its taps are exactly the
            # centre (kh=1,kw=1) Cin block of the packed 3x3 taps (pad=1
            # cancels the centre offset), so append Cp extra output columns
            # whose only non-zero rows are that block holding ws.
            ws_rows = jnp.transpose(self.ws_pt[:, :, 0, 0], (1, 0))  # [Cin,Cout]
            ws_block = jnp.zeros((self.k1p, self.cp), jnp.float32)
            ws_block = ws_block.at[4 * in_channels:5 * in_channels,
                                   :out_channels].set(ws_rows)
            self.w1 = jnp.concatenate([w1_packed, ws_block],
                                      axis=1).astype(jnp.bfloat16)
        else:
            self.w1 = w1_packed.astype(jnp.bfloat16)
            if self.projection:
                self.ksp = _round_up(in_channels, LANE)
                self.ws = _pack_conv_weight(
                    self.ws_pt, self.ksp, self.cp).astype(jnp.bfloat16)
        self.w2 = _pack_conv_weight(self.w2_pt, self.k2p,
                                    self.cp).astype(jnp.bfloat16)

    def __call__(self, x_nchw):
        x = jnp.transpose(x_nchw, (0, 2, 3, 1)).astype(jnp.float32)  # NHWC
        n, h, w, _ = x.shape
        ho = (h + 2 - 3) // self.stride + 1
        wo = (w + 2 - 3) // self.stride + 1
        m = n * ho * wo
        cout, cp = self.out_channels, self.cp

        # M tile derived from the largest double-buffered working set
        cpt1 = 2 * cp if self.fold_projection else cp
        tm = min(_choose_tm(m, self.k1p, cpt1), _choose_tm(m, self.k2p, cp))
        mp = _round_up(m, tm)

        # ---- conv1 (+ folded 1x1 shortcut) + partial stats ----------------
        taps1 = extract_taps_packed(x, 3, self.stride, 1, mp, self.k1p)
        y1c, st1c = conv_stats_pallas(taps1, self.w1, tm=tm)
        st1 = st1c[:, :cp]
        out1 = bn_act_pallas(y1c, st1, self.g1, self.beta1,
                             count=m, relu=True, tm=tm, cp=cp,
                             y_col=0)                          # [Mp, Cp] bf16

        # ---- shortcut ------------------------------------------------------
        if self.projection and not self.fold_projection:
            taps_s = extract_taps_packed(x, 1, self.stride, 0, mp, self.ksp)
            ys, sts = conv_stats_pallas(taps_s, self.ws, tm=tm)
        elif not self.projection:
            sc = x.reshape(m, cout).astype(jnp.bfloat16)
            sc = jnp.pad(sc, ((0, mp - m), (0, cp - cout)))

        # ---- conv2 + stats, fused BN2 (+shortcut BN) + add + ReLU ----------
        out1_nhwc = out1[:m, :cout].reshape(n, ho, wo, cout)
        taps2 = extract_taps_packed(out1_nhwc, 3, 1, 1, mp, self.k2p)
        y2, st2 = conv_stats_pallas(taps2, self.w2, tm=tm)
        if self.projection:
            if self.fold_projection:
                out = bn2_add_relu_pallas(y2, st2, self.g2, self.beta2,
                                          y1c, st1c[:, cp:], self.gs,
                                          self.betas,
                                          count=m, tm=tm, cp=cp, ys_col=1)
            else:
                out = bn2_add_relu_pallas(y2, st2, self.g2, self.beta2,
                                          ys, sts, self.gs, self.betas,
                                          count=m, tm=tm, cp=cp, ys_col=0)
        else:
            out = bn_add_relu_pallas(y2, st2, self.g2, self.beta2, sc,
                                     count=m, tm=tm, cp=cp)

        out = out[:m, :cout].reshape(n, ho, wo, cout)
        return jnp.transpose(out, (0, 3, 1, 2))                # NHWC -> NCHW


# ---------------------------------------------------------------------------
# Pure-JAX f32 reference (training-mode BatchNorm, like a fresh nn.Module)
# ---------------------------------------------------------------------------
def reference_forward(block, x_nchw):
    x = jnp.transpose(x_nchw, (0, 2, 3, 1))
    co = block.out_channels

    def conv(y, w_pt, b, stride, pad):
        w_hwio = jnp.transpose(w_pt, (2, 3, 1, 0))
        out = lax.conv_general_dilated(
            y, w_hwio, (stride, stride), [(pad, pad), (pad, pad)],
            dimension_numbers=("NHWC", "HWIO", "NHWC"))
        return out + b

    def bn(y, g, bt):
        mu = jnp.mean(y, axis=(0, 1, 2), keepdims=True)
        var = jnp.mean(jnp.square(y - mu), axis=(0, 1, 2), keepdims=True)
        return (y - mu) * lax.rsqrt(var + BN_EPS) * g + bt

    out = jax.nn.relu(bn(conv(x, block.w1_pt, block.b1, block.stride, 1),
                         block.g1[0, :co], block.beta1[0, :co]))
    out = bn(conv(out, block.w2_pt, block.b2, 1, 1),
             block.g2[0, :co], block.beta2[0, :co])
    if block.projection:
        sc = bn(conv(x, block.ws_pt, block.bs, block.stride, 0),
                block.gs[0, :co], block.betas[0, :co])
    else:
        sc = x
    return jnp.transpose(jax.nn.relu(out + sc), (0, 3, 1, 2))


# ---------------------------------------------------------------------------
if __name__ == "__main__":
    import numpy as np

    def run_case(batch, in_ch, out_ch, spatial, stride, seed, fold=True):
        x = jax.random.normal(jax.random.PRNGKey(0),
                              (batch, in_ch, spatial, spatial), jnp.float32)
        block = ResidualBlockPallas(in_ch, out_ch, stride=stride,
                                    key=jax.random.PRNGKey(seed),
                                    fold_projection=fold)
        y = jax.block_until_ready(jax.jit(block.__call__)(x))
        y_ref = jax.block_until_ready(reference_forward(block, x))
        # bf16 MXU operands + bf16 intermediates vs f32 reference
        np.testing.assert_allclose(np.asarray(y), np.asarray(y_ref),
                                   rtol=3e-2, atol=3e-2)

    run_case(2, 4, 8, 16, 2, seed=1)               # projection, folded 1x1
    run_case(2, 8, 8, 8, 1, seed=2)                # identity shortcut
    run_case(2, 4, 8, 16, 2, seed=3, fold=False)   # projection, separate matmul
    print("KERNEL_OK")
</pallas_src>

<mosaic_0001>
module attributes {stable_mosaic.version = 11 : i64} {
  func.func @_conv_stats_kernel(%arg0: i32, %arg1: memref<128x128xbf16, #tpu.memory_space<vmem>>, %arg2: memref<128x256xbf16, #tpu.memory_space<vmem>>, %arg3: memref<128x256xbf16, #tpu.memory_space<vmem>>, %arg4: memref<8x256xf32, #tpu.memory_space<vmem>>) attributes {dimension_semantics = [#tpu.dimension_semantics<parallel>], iteration_bounds = array<i64: 1>, scalar_prefetch = 0 : i64, scratch_operands = 0 : i64, tpu.core_type = #tpu.core_type<tc>, window_params = [{transform_indices = @transform_0, window_bounds = array<i64: 128, 128>}, {pipeline_mode = #tpu.pipeline_mode<synchronous>, transform_indices = @transform_1, window_bounds = array<i64: 128, 256>}, {transform_indices = @transform_2, window_bounds = array<i64: 128, 256>}, {transform_indices = @transform_3, window_bounds = array<i64: 8, 256>}]} {
    %c0 = arith.constant 0 : index
    %c0_0 = arith.constant 0 : index
    %0 = vector.load %arg1[%c0, %c0_0] : memref<128x128xbf16, #tpu.memory_space<vmem>>, vector<128x128xbf16>
    %c0_1 = arith.constant 0 : index
    %c0_2 = arith.constant 0 : index
    %1 = vector.load %arg2[%c0_1, %c0_2] : memref<128x256xbf16, #tpu.memory_space<vmem>>, vector<128x256xbf16>
    %cst = arith.constant dense<0.000000e+00> : vector<128x256xf32>
    %2 = tpu.matmul %0, %1, %cst {dimension_numbers = #tpu.dot_dimension_numbers<[1], [0], [0], [1], [0, 0, 1, 1], [], []>} : vector<128x128xbf16>, vector<128x256xbf16>, vector<128x256xf32> -> vector<128x256xf32>
    %3 = arith.truncf %2 : vector<128x256xf32> to vector<128x256xbf16>
    %c0_3 = arith.constant 0 : index
    %c0_4 = arith.constant 0 : index
    %4 = vector.load %arg3[%c0_3, %c0_4] : memref<128x256xbf16, #tpu.memory_space<vmem>>, vector<128x256xbf16>
    tpu.vector_store %arg3[%c0_3, %c0_4], %3 {strides = array<i32>} : memref<128x256xbf16, #tpu.memory_space<vmem>>, vector<128x256xbf16>,
    %cst_5 = arith.constant dense<0.000000e+00> : vector<256xf32>
    %5 = vector.multi_reduction <add>, %2, %cst_5 [0] : vector<128x256xf32> to vector<256xf32>
    %6 = vector.shape_cast %5 : vector<256xf32> to vector<1x256xf32>
    %7 = arith.mulf %2, %2 : vector<128x256xf32>
    %cst_6 = arith.constant dense<0.000000e+00> : vector<256xf32>
    %8 = vector.multi_reduction <add>, %7, %cst_6 [0] : vector<128x256xf32> to vector<256xf32>
    %9 = vector.shape_cast %8 : vector<256xf32> to vector<1x256xf32>
    %10 = tpu.iota {dimensions = array<i32: 0>} : vector<8x256xi32>
    %c0_i32 = arith.constant 0 : i32
    %11 = vector.broadcast %c0_i32 : i32 to vector<8x256xi32>
    %12 = arith.cmpi eq, %10, %11 : vector<8x256xi32>
    %cst_7 = arith.constant 0.000000e+00 : f32
    %13 = vector.shape_cast %6 : vector<1x256xf32> to vector<1x256xf32>
    %14 = vector.broadcast %13 : vector<1x256xf32> to vector<8x256xf32>
    %15 = vector.broadcast %cst_7 : f32 to vector<8x256xf32>
    %16 = arith.select %12, %14, %15 : vector<8x256xi1>, vector<8x256xf32>
    %c1_i32 = arith.constant 1 : i32
    %17 = vector.broadcast %c1_i32 : i32 to vector<8x256xi32>
    %18 = arith.cmpi eq, %10, %17 : vector<8x256xi32>
    %cst_8 = arith.constant 0.000000e+00 : f32
    %19 = vector.shape_cast %9 : vector<1x256xf32> to vector<1x256xf32>
    %20 = vector.broadcast %19 : vector<1x256xf32> to vector<8x256xf32>
    %21 = vector.broadcast %cst_8 : f32 to vector<8x256xf32>
    %22 = arith.select %18, %20, %21 : vector<8x256xi1>, vector<8x256xf32>
    %23 = arith.addf %16, %22 : vector<8x256xf32>
    %c0_9 = arith.constant 0 : index
    %c0_10 = arith.constant 0 : index
    %24 = vector.load %arg4[%c0_9, %c0_10] : memref<8x256xf32, #tpu.memory_space<vmem>>, vector<8x256xf32>
    tpu.vector_store %arg4[%c0_9, %c0_10], %23 {strides = array<i32>} : memref<8x256xf32, #tpu.memory_space<vmem>>, vector<8x256xf32>,
    return
  }
  func.func @transform_0(%arg0: i32) -> (i32, i32) {
    %c0_i32 = arith.constant 0 : i32
    %c0_i32_0 = arith.constant 0 : i32
    return %arg0, %c0_i32 : i32, i32
  }
  func.func @transform_1(%arg0: i32) -> (i32, i32) {
    %c0_i32 = arith.constant 0 : i32
    %c0_i32_0 = arith.constant 0 : i32
    %c0_i32_1 = arith.constant 0 : i32
    return %c0_i32, %c0_i32_0 : i32, i32
  }
  func.func @transform_2(%arg0: i32) -> (i32, i32) {
    %c0_i32 = arith.constant 0 : i32
    %c0_i32_0 = arith.constant 0 : i32
    return %arg0, %c0_i32 : i32, i32
  }
  func.func @transform_3(%arg0: i32) -> (i32, i32) {
    %c0_i32 = arith.constant 0 : i32
    %c0_i32_0 = arith.constant 0 : i32
    return %arg0, %c0_i32 : i32, i32
  }
}

module attributes {stable_mosaic.version = 11 : i64} {
  func.func @_bn_act_kernel(%arg0: i32, %arg1: memref<128x128xbf16, #tpu.memory_space<vmem>>, %arg2: memref<8x128xf32, #tpu.memory_space<vmem>>, %arg3: memref<1x128xf32, #tpu.memory_space<vmem>>, %arg4: memref<1x128xf32, #tpu.memory_space<vmem>>, %arg5: memref<128x128xbf16, #tpu.memory_space<vmem>>) attributes {dimension_semantics = [#tpu.dimension_semantics<parallel>], iteration_bounds = array<i64: 1>, scalar_prefetch = 0 : i64, scratch_operands = 0 : i64, tpu.core_type = #tpu.core_type<tc>, window_params = [{transform_indices = @transform_0, window_bounds = array<i64: 128, 128>}, {pipeline_mode = #tpu.pipeline_mode<synchronous>, transform_indices = @transform_1, window_bounds = array<i64: 8, 128>}, {pipeline_mode = #tpu.pipeline_mode<synchronous>, transform_indices = @transform_2, window_bounds = array<i64: 1, 128>}, {pipeline_mode = #tpu.pipeline_mode<synchronous>, transform_indices = @transform_3, window_bounds = array<i64: 1, 128>}, {transform_indices = @transform_4, window_bounds = array<i64: 128, 128>}]} {
    %c0 = arith.constant 0 : index
    %c0_0 = arith.constant 0 : index
    %0 = vector.load %arg2[%c0, %c0_0] : memref<8x128xf32, #tpu.memory_space<vmem>>, vector<8x128xf32>
    %c0_1 = arith.constant 0 : index
    %c0_2 = arith.constant 0 : index
    %1 = vector.load %arg3[%c0_1, %c0_2] : memref<1x128xf32, #tpu.memory_space<vmem>>, vector<1x128xf32>
    %c0_3 = arith.constant 0 : index
    %c0_4 = arith.constant 0 : index
    %2 = vector.load %arg4[%c0_3, %c0_4] : memref<1x128xf32, #tpu.memory_space<vmem>>, vector<1x128xf32>
    %3 = vector.extract_strided_slice %0 {offsets = [0, 0], sizes = [1, 128], strides = [1, 1]} : vector<8x128xf32> to vector<1x128xf32>
    %cst = arith.constant 7.812500e-03 : f32
    %4 = vector.broadcast %cst : f32 to vector<1x128xf32>
    %5 = arith.mulf %3, %4 : vector<1x128xf32>
    %6 = vector.extract_strided_slice %0 {offsets = [1, 0], sizes = [1, 128], strides = [1, 1]} : vector<8x128xf32> to vector<1x128xf32>
    %cst_5 = arith.constant 7.812500e-03 : f32
    %7 = vector.broadcast %cst_5 : f32 to vector<1x128xf32>
    %8 = arith.mulf %6, %7 : vector<1x128xf32>
    %9 = arith.mulf %5, %5 : vector<1x128xf32>
    %10 = arith.subf %8, %9 : vector<1x128xf32>
    %cst_6 = arith.constant 0.000000e+00 : f32
    %11 = vector.broadcast %cst_6 : f32 to vector<1x128xf32>
    %12 = arith.maximumf %10, %11 : vector<1x128xf32>
    %cst_7 = arith.constant 9.99999974E-6 : f32
    %13 = vector.broadcast %cst_7 : f32 to vector<1x128xf32>
    %14 = arith.addf %12, %13 : vector<1x128xf32>
    %15 = math.rsqrt %14 : vector<1x128xf32>
    %16 = arith.mulf %1, %15 : vector<1x128xf32>
    %17 = arith.mulf %5, %16 : vector<1x128xf32>
    %18 = arith.subf %2, %17 : vector<1x128xf32>
    %c0_8 = arith.constant 0 : index
    %c0_9 = arith.constant 0 : index
    %19 = vector.load %arg1[%c0_8, %c0_9] : memref<128x128xbf16, #tpu.memory_space<vmem>>, vector<128x128xbf16>
    %20 = arith.extf %19 : vector<128x128xbf16> to vector<128x128xf32>
    %21 = vector.broadcast %16 : vector<1x128xf32> to vector<128x128xf32>
    %22 = arith.mulf %20, %21 : vector<128x128xf32>
    %23 = vector.broadcast %18 : vector<1x128xf32> to vector<128x128xf32>
    %24 = arith.addf %22, %23 : vector<128x128xf32>
    %cst_10 = arith.constant 0.000000e+00 : f32
    %25 = vector.broadcast %cst_10 : f32 to vector<128x128xf32>
    %26 = arith.maximumf %24, %25 : vector<128x128xf32>
    %27 = arith.truncf %26 : vector<128x128xf32> to vector<128x128xbf16>
    %c0_11 = arith.constant 0 : index
    %c0_12 = arith.constant 0 : index
    %28 = vector.load %arg5[%c0_11, %c0_12] : memref<128x128xbf16, #tpu.memory_space<vmem>>, vector<128x128xbf16>
    tpu.vector_store %arg5[%c0_11, %c0_12], %27 {strides = array<i32>} : memref<128x128xbf16, #tpu.memory_space<vmem>>, vector<128x128xbf16>,
    return
  }
  func.func @transform_0(%arg0: i32) -> (i32, i32) {
    %c0_i32 = arith.constant 0 : i32
    %c0_i32_0 = arith.constant 0 : i32
    return %arg0, %c0_i32 : i32, i32
  }
  func.func @transform_1(%arg0: i32) -> (i32, i32) {
    %c0_i32 = arith.constant 0 : i32
    %c0_i32_0 = arith.constant 0 : i32
    %c0_i32_1 = arith.constant 0 : i32
    return %c0_i32, %c0_i32_0 : i32, i32
  }
  func.func @transform_2(%arg0: i32) -> (i32, i32) {
    %c0_i32 = arith.constant 0 : i32
    %c0_i32_0 = arith.constant 0 : i32
    %c0_i32_1 = arith.constant 0 : i32
    return %c0_i32, %c0_i32_0 : i32, i32
  }
  func.func @transform_3(%arg0: i32) -> (i32, i32) {
    %c0_i32 = arith.constant 0 : i32
    %c0_i32_0 = arith.constant 0 : i32
    %c0_i32_1 = arith.constant 0 : i32
    return %c0_i32, %c0_i32_0 : i32, i32
  }
  func.func @transform_4(%arg0: i32) -> (i32, i32) {
    %c0_i32 = arith.constant 0 : i32
    %c0_i32_0 = arith.constant 0 : i32
    return %arg0, %c0_i32 : i32, i32
  }
}

module attributes {stable_mosaic.version = 11 : i64} {
  func.func @_conv_stats_kernel(%arg0: i32, %arg1: memref<128x128xbf16, #tpu.memory_space<vmem>>, %arg2: memref<128x128xbf16, #tpu.memory_space<vmem>>, %arg3: memref<128x128xbf16, #tpu.memory_space<vmem>>, %arg4: memref<8x128xf32, #tpu.memory_space<vmem>>) attributes {dimension_semantics = [#tpu.dimension_semantics<parallel>], iteration_bounds = array<i64: 1>, scalar_prefetch = 0 : i64, scratch_operands = 0 : i64, tpu.core_type = #tpu.core_type<tc>, window_params = [{transform_indices = @transform_0, window_bounds = array<i64: 128, 128>}, {pipeline_mode = #tpu.pipeline_mode<synchronous>, transform_indices = @transform_1, window_bounds = array<i64: 128, 128>}, {transform_indices = @transform_2, window_bounds = array<i64: 128, 128>}, {transform_indices = @transform_3, window_bounds = array<i64: 8, 128>}]} {
    %c0 = arith.constant 0 : index
    %c0_0 = arith.constant 0 : index
    %0 = vector.load %arg1[%c0, %c0_0] : memref<128x128xbf16, #tpu.memory_space<vmem>>, vector<128x128xbf16>
    %c0_1 = arith.constant 0 : index
    %c0_2 = arith.constant 0 : index
    %1 = vector.load %arg2[%c0_1, %c0_2] : memref<128x128xbf16, #tpu.memory_space<vmem>>, vector<128x128xbf16>
    %cst = arith.constant dense<0.000000e+00> : vector<128x128xf32>
    %2 = tpu.matmul %0, %1, %cst {dimension_numbers = #tpu.dot_dimension_numbers<[1], [0], [0], [1], [0, 0, 1, 1], [], []>} : vector<128x128xbf16>, vector<128x128xbf16>, vector<128x128xf32> -> vector<128x128xf32>
    %3 = arith.truncf %2 : vector<128x128xf32> to vector<128x128xbf16>
    %c0_3 = arith.constant 0 : index
    %c0_4 = arith.constant 0 : index
    %4 = vector.load %arg3[%c0_3, %c0_4] : memref<128x128xbf16, #tpu.memory_space<vmem>>, vector<128x128xbf16>
    tpu.vector_store %arg3[%c0_3, %c0_4], %3 {strides = array<i32>} : memref<128x128xbf16, #tpu.memory_space<vmem>>, vector<128x128xbf16>,
    %cst_5 = arith.constant dense<0.000000e+00> : vector<128xf32>
    %5 = vector.multi_reduction <add>, %2, %cst_5 [0] : vector<128x128xf32> to vector<128xf32>
    %6 = vector.shape_cast %5 : vector<128xf32> to vector<1x128xf32>
    %7 = arith.mulf %2, %2 : vector<128x128xf32>
    %cst_6 = arith.constant dense<0.000000e+00> : vector<128xf32>
    %8 = vector.multi_reduction <add>, %7, %cst_6 [0] : vector<128x128xf32> to vector<128xf32>
    %9 = vector.shape_cast %8 : vector<128xf32> to vector<1x128xf32>
    %10 = tpu.iota {dimensions = array<i32: 0>} : vector<8x128xi32>
    %c0_i32 = arith.constant 0 : i32
    %11 = vector.broadcast %c0_i32 : i32 to vector<8x128xi32>
    %12 = arith.cmpi eq, %10, %11 : vector<8x128xi32>
    %cst_7 = arith.constant 0.000000e+00 : f32
    %13 = vector.shape_cast %6 : vector<1x128xf32> to vector<1x128xf32>
    %14 = vector.broadcast %13 : vector<1x128xf32> to vector<8x128xf32>
    %15 = vector.broadcast %cst_7 : f32 to vector<8x128xf32>
    %16 = arith.select %12, %14, %15 : vector<8x128xi1>, vector<8x128xf32>
    %c1_i32 = arith.constant 1 : i32
    %17 = vector.broadcast %c1_i32 : i32 to vector<8x128xi32>
    %18 = arith.cmpi eq, %10, %17 : vector<8x128xi32>
    %cst_8 = arith.constant 0.000000e+00 : f32
    %19 = vector.shape_cast %9 : vector<1x128xf32> to vector<1x128xf32>
    %20 = vector.broadcast %19 : vector<1x128xf32> to vector<8x128xf32>
    %21 = vector.broadcast %cst_8 : f32 to vector<8x128xf32>
    %22 = arith.select %18, %20, %21 : vector<8x128xi1>, vector<8x128xf32>
    %23 = arith.addf %16, %22 : vector<8x128xf32>
    %c0_9 = arith.constant 0 : index
    %c0_10 = arith.constant 0 : index
    %24 = vector.load %arg4[%c0_9, %c0_10] : memref<8x128xf32, #tpu.memory_space<vmem>>, vector<8x128xf32>
    tpu.vector_store %arg4[%c0_9, %c0_10], %23 {strides = array<i32>} : memref<8x128xf32, #tpu.memory_space<vmem>>, vector<8x128xf32>,
    return
  }
  func.func @transform_0(%arg0: i32) -> (i32, i32) {
    %c0_i32 = arith.constant 0 : i32
    %c0_i32_0 = arith.constant 0 : i32
    return %arg0, %c0_i32 : i32, i32
  }
  func.func @transform_1(%arg0: i32) -> (i32, i32) {
    %c0_i32 = arith.constant 0 : i32
    %c0_i32_0 = arith.constant 0 : i32
    %c0_i32_1 = arith.constant 0 : i32
    return %c0_i32, %c0_i32_0 : i32, i32
  }
  func.func @transform_2(%arg0: i32) -> (i32, i32) {
    %c0_i32 = arith.constant 0 : i32
    %c0_i32_0 = arith.constant 0 : i32
    return %arg0, %c0_i32 : i32, i32
  }
  func.func @transform_3(%arg0: i32) -> (i32, i32) {
    %c0_i32 = arith.constant 0 : i32
    %c0_i32_0 = arith.constant 0 : i32
    return %arg0, %c0_i32 : i32, i32
  }
}

module attributes {stable_mosaic.version = 11 : i64} {
  func.func @_bn2_add_relu_kernel(%arg0: i32, %arg1: memref<128x128xbf16, #tpu.memory_space<vmem>>, %arg2: memref<8x128xf32, #tpu.memory_space<vmem>>, %arg3: memref<1x128xf32, #tpu.memory_space<vmem>>, %arg4: memref<1x128xf32, #tpu.memory_space<vmem>>, %arg5: memref<128x128xbf16, #tpu.memory_space<vmem>>, %arg6: memref<8x128xf32, #tpu.memory_space<vmem>>, %arg7: memref<1x128xf32, #tpu.memory_space<vmem>>, %arg8: memref<1x128xf32, #tpu.memory_space<vmem>>, %arg9: memref<128x128xf32, #tpu.memory_space<vmem>>) attributes {dimension_semantics = [#tpu.dimension_semantics<parallel>], iteration_bounds = array<i64: 1>, scalar_prefetch = 0 : i64, scratch_operands = 0 : i64, tpu.core_type = #tpu.core_type<tc>, window_params = [{transform_indices = @transform_0, window_bounds = array<i64: 128, 128>}, {pipeline_mode = #tpu.pipeline_mode<synchronous>, transform_indices = @transform_1, window_bounds = array<i64: 8, 128>}, {pipeline_mode = #tpu.pipeline_mode<synchronous>, transform_indices = @transform_2, window_bounds = array<i64: 1, 128>}, {pipeline_mode = #tpu.pipeline_mode<synchronous>, transform_indices = @transform_3, window_bounds = array<i64: 1, 128>}, {transform_indices = @transform_4, window_bounds = array<i64: 128, 128>}, {pipeline_mode = #tpu.pipeline_mode<synchronous>, transform_indices = @transform_5, window_bounds = array<i64: 8, 128>}, {pipeline_mode = #tpu.pipeline_mode<synchronous>, transform_indices = @transform_6, window_bounds = array<i64: 1, 128>}, {pipeline_mode = #tpu.pipeline_mode<synchronous>, transform_indices = @transform_7, window_bounds = array<i64: 1, 128>}, {transform_indices = @transform_8, window_bounds = array<i64: 128, 128>}]} {
    %c0 = arith.constant 0 : index
    %c0_0 = arith.constant 0 : index
    %0 = vector.load %arg2[%c0, %c0_0] : memref<8x128xf32, #tpu.memory_space<vmem>>, vector<8x128xf32>
    %c0_1 = arith.constant 0 : index
    %c0_2 = arith.constant 0 : index
    %1 = vector.load %arg3[%c0_1, %c0_2] : memref<1x128xf32, #tpu.memory_space<vmem>>, vector<1x128xf32>
    %c0_3 = arith.constant 0 : index
    %c0_4 = arith.constant 0 : index
    %2 = vector.load %arg4[%c0_3, %c0_4] : memref<1x128xf32, #tpu.memory_space<vmem>>, vector<1x128xf32>
    %3 = vector.extract_strided_slice %0 {offsets = [0, 0], sizes = [1, 128], strides = [1, 1]} : vector<8x128xf32> to vector<1x128xf32>
    %cst = arith.constant 7.812500e-03 : f32
    %4 = vector.broadcast %cst : f32 to vector<1x128xf32>
    %5 = arith.mulf %3, %4 : vector<1x128xf32>
    %6 = vector.extract_strided_slice %0 {offsets = [1, 0], sizes = [1, 128], strides = [1, 1]} : vector<8x128xf32> to vector<1x128xf32>
    %cst_5 = arith.constant 7.812500e-03 : f32
    %7 = vector.broadcast %cst_5 : f32 to vector<1x128xf32>
    %8 = arith.mulf %6, %7 : vector<1x128xf32>
    %9 = arith.mulf %5, %5 : vector<1x128xf32>
    %10 = arith.subf %8, %9 : vector<1x128xf32>
    %cst_6 = arith.constant 0.000000e+00 : f32
    %11 = vector.broadcast %cst_6 : f32 to vector<1x128xf32>
    %12 = arith.maximumf %10, %11 : vector<1x128xf32>
    %cst_7 = arith.constant 9.99999974E-6 : f32
    %13 = vector.broadcast %cst_7 : f32 to vector<1x128xf32>
    %14 = arith.addf %12, %13 : vector<1x128xf32>
    %15 = math.rsqrt %14 : vector<1x128xf32>
    %16 = arith.mulf %1, %15 : vector<1x128xf32>
    %17 = arith.mulf %5, %16 : vector<1x128xf32>
    %18 = arith.subf %2, %17 : vector<1x128xf32>
    %c0_8 = arith.constant 0 : index
    %c0_9 = arith.constant 0 : index
    %19 = vector.load %arg6[%c0_8, %c0_9] : memref<8x128xf32, #tpu.memory_space<vmem>>, vector<8x128xf32>
    %c0_10 = arith.constant 0 : index
    %c0_11 = arith.constant 0 : index
    %20 = vector.load %arg7[%c0_10, %c0_11] : memref<1x128xf32, #tpu.memory_space<vmem>>, vector<1x128xf32>
    %c0_12 = arith.constant 0 : index
    %c0_13 = arith.constant 0 : index
    %21 = vector.load %arg8[%c0_12, %c0_13] : memref<1x128xf32, #tpu.memory_space<vmem>>, vector<1x128xf32>
    %22 = vector.extract_strided_slice %19 {offsets = [0, 0], sizes = [1, 128], strides = [1, 1]} : vector<8x128xf32> to vector<1x128xf32>
    %cst_14 = arith.constant 7.812500e-03 : f32
    %23 = vector.broadcast %cst_14 : f32 to vector<1x128xf32>
    %24 = arith.mulf %22, %23 : vector<1x128xf32>
    %25 = vector.extract_strided_slice %19 {offsets = [1, 0], sizes = [1, 128], strides = [1, 1]} : vector<8x128xf32> to vector<1x128xf32>
    %cst_15 = arith.constant 7.812500e-03 : f32
    %26 = vector.broadcast %cst_15 : f32 to vector<1x128xf32>
    %27 = arith.mulf %25, %26 : vector<1x128xf32>
    %28 = arith.mulf %24, %24 : vector<1x128xf32>
    %29 = arith.subf %27, %28 : vector<1x128xf32>
    %cst_16 = arith.constant 0.000000e+00 : f32
    %30 = vector.broadcast %cst_16 : f32 to vector<1x128xf32>
    %31 = arith.maximumf %29, %30 : vector<1x128xf32>
    %cst_17 = arith.constant 9.99999974E-6 : f32
    %32 = vector.broadcast %cst_17 : f32 to vector<1x128xf32>
    %33 = arith.addf %31, %32 : vector<1x128xf32>
    %34 = math.rsqrt %33 : vector<1x128xf32>
    %35 = arith.mulf %20, %34 : vector<1x128xf32>
    %36 = arith.mulf %24, %35 : vector<1x128xf32>
    %37 = arith.subf %21, %36 : vector<1x128xf32>
    %c0_18 = arith.constant 0 : index
    %c0_19 = arith.constant 0 : index
    %38 = vector.load %arg1[%c0_18, %c0_19] : memref<128x128xbf16, #tpu.memory_space<vmem>>, vector<128x128xbf16>
    %39 = arith.extf %38 : vector<128x128xbf16> to vector<128x128xf32>
    %40 = vector.broadcast %16 : vector<1x128xf32> to vector<128x128xf32>
    %41 = arith.mulf %39, %40 : vector<128x128xf32>
    %42 = vector.broadcast %18 : vector<1x128xf32> to vector<128x128xf32>
    %43 = arith.addf %41, %42 : vector<128x128xf32>
    %c0_20 = arith.constant 0 : index
    %c0_21 = arith.constant 0 : index
    %44 = vector.load %arg5[%c0_20, %c0_21] : memref<128x128xbf16, #tpu.memory_space<vmem>>, vector<128x128xbf16>
    %45 = arith.extf %44 : vector<128x128xbf16> to vector<128x128xf32>
    %46 = vector.broadcast %35 : vector<1x128xf32> to vector<128x128xf32>
    %47 = arith.mulf %45, %46 : vector<128x128xf32>
    %48 = vector.broadcast %37 : vector<1x128xf32> to vector<128x128xf32>
    %49 = arith.addf %47, %48 : vector<128x128xf32>
    %50 = arith.addf %43, %49 : vector<128x128xf32>
    %cst_22 = arith.constant 0.000000e+00 : f32
    %51 = vector.broadcast %cst_22 : f32 to vector<128x128xf32>
    %52 = arith.maximumf %50, %51 : vector<128x128xf32>
    %c0_23 = arith.constant 0 : index
    %c0_24 = arith.constant 0 : index
    %53 = vector.load %arg9[%c0_23, %c0_24] : memref<128x128xf32, #tpu.memory_space<vmem>>, vector<128x128xf32>
    tpu.vector_store %arg9[%c0_23, %c0_24], %52 {strides = array<i32>} : memref<128x128xf32, #tpu.memory_space<vmem>>, vector<128x128xf32>,
    return
  }
  func.func @transform_0(%arg0: i32) -> (i32, i32) {
    %c0_i32 = arith.constant 0 : i32
    %c0_i32_0 = arith.constant 0 : i32
    return %arg0, %c0_i32 : i32, i32
  }
  func.func @transform_1(%arg0: i32) -> (i32, i32) {
    %c0_i32 = arith.constant 0 : i32
    %c0_i32_0 = arith.constant 0 : i32
    %c0_i32_1 = arith.constant 0 : i32
    return %c0_i32, %c0_i32_0 : i32, i32
  }
  func.func @transform_2(%arg0: i32) -> (i32, i32) {
    %c0_i32 = arith.constant 0 : i32
    %c0_i32_0 = arith.constant 0 : i32
    %c0_i32_1 = arith.constant 0 : i32
    return %c0_i32, %c0_i32_0 : i32, i32
  }
  func.func @transform_3(%arg0: i32) -> (i32, i32) {
    %c0_i32 = arith.constant 0 : i32
    %c0_i32_0 = arith.constant 0 : i32
    %c0_i32_1 = arith.constant 0 : i32
    return %c0_i32, %c0_i32_0 : i32, i32
  }
  func.func @transform_4(%arg0: i32) -> (i32, i32) {
    %c1_i32 = arith.constant 1 : i32
    %c0_i32 = arith.constant 0 : i32
    return %arg0, %c1_i32 : i32, i32
  }
  func.func @transform_5(%arg0: i32) -> (i32, i32) {
    %c0_i32 = arith.constant 0 : i32
    %c0_i32_0 = arith.constant 0 : i32
    %c0_i32_1 = arith.constant 0 : i32
    return %c0_i32, %c0_i32_0 : i32, i32
  }
  func.func @transform_6(%arg0: i32) -> (i32, i32) {
    %c0_i32 = arith.constant 0 : i32
    %c0_i32_0 = arith.constant 0 : i32
    %c0_i32_1 = arith.constant 0 : i32
    return %c0_i32, %c0_i32_0 : i32, i32
  }
  func.func @transform_7(%arg0: i32) -> (i32, i32) {
    %c0_i32 = arith.constant 0 : i32
    %c0_i32_0 = arith.constant 0 : i32
    %c0_i32_1 = arith.constant 0 : i32
    return %c0_i32, %c0_i32_0 : i32, i32
  }
  func.func @transform_8(%arg0: i32) -> (i32, i32) {
    %c0_i32 = arith.constant 0 : i32
    %c0_i32_0 = arith.constant 0 : i32
    return %arg0, %c0_i32 : i32, i32
  }
}

</mosaic_0001>

<llo_original>
// kernel: a_call__.5
$region0: #{a_call__.5}
  #allocation0 [shape = 'u32[]', space=smem, size = 0x4, offset = 0x4, fixed_abs, tag = 'smem constant byte address 0x4 - core index']
  #allocation1 [shape = 'u32[144,128]{1,0:T(1,128)}', space=vmem, size = 0x12000, scoped, tag = 'internal scratch']
  %s0 = inlined_call_operand.vmem [shape: bf16[128,256], index: 0, kind: input, shape index: {}]
  %s1 = inlined_call_operand.vmem [shape: f32[8,128], index: 1, kind: input, shape index: {}]
  %s2 = inlined_call_operand.vmem [shape: f32[1,128], index: 2, kind: input, shape index: {}]
  %s3 = inlined_call_operand.vmem [shape: f32[1,128], index: 3, kind: input, shape index: {}]
  %s4 = inlined_call_operand.vmem [shape: bf16[128,128], index: 4, kind: output, shape index: {}]
  %s5 = sld [smem:[#allocation0]]
  $region67: #{a_call__.5} parent=0
    _
  %s7 = ssub.s32 1, %s5
  %s8 = scalar_select 0, %s7, %s5
  $region1: #{a_call__.5} parent=0
    #allocation2 [shape = 'u8[32768]{0}', space=vmem, size = 0x8000, scoped, tag = 'input window, operand 0, single buffered']
    // Predicated region
    $region2: #{a_call__.5} parent=1 // pred_check
      _
    $region3: #{a_call__.5} parent=1 // pred_check_branch
      %10 = sbr.rel (0) target = $region5
    $region4: #{a_call__.5} parent=1 // pred_region
      // Predicated region
      $region6: #{a_call__.5} parent=4 // pred_check
        _
      $region7: #{a_call__.5} parent=4 // pred_check_branch
        %12 = sbr.rel (0) target = $region9
      $region8: #{a_call__.5} parent=4 // pred_region
        // Predicated region
        $region10: #{a_call__.5} parent=8 // pred_check
          _
        $region11: #{a_call__.5} parent=8 // pred_check_branch
          %14 = sbr.rel target = $region13
        $region12: #{a_call__.5} parent=8 // pred_region
          // Predicated region
          $region25: #{a_call__.5} parent=12 // pred_check
            _
          $region26: #{a_call__.5} parent=12 // pred_check_branch
            %59 = sbr.rel (0) target = $region28
          $region27: #{a_call__.5} parent=12 // pred_region
            loop: start=0, step=1, limit=1
            $region29: #{a_call__.5} parent=27 // loop_pre_header
              _
            $region30: #{a_call__.5} parent=27 // loop_header
              %s61 = sphi 0, %s65
              %p62 = scmp.ge.s32.totalorder %s61, 1
              %s66 = sphi %s0, %s0
              %s67 = sphi [#allocation2], [#allocation2]
            $region31: #{a_call__.5} parent=27 // loop_header_branch
              %64 = sbr.rel (%p62) target = $region35
            $region32: #{a_call__.5} parent=27 // loop_body
              _
            $region33: #{a_call__.5} parent=27 // loop_footer
              %s65 = sadd.s32 1, %s61
            $region34: #{a_call__.5} parent=27 // loop_footer_branch
              %60 = sbr.rel target = $region30
            $region35: #{a_call__.5} parent=27 // loop_exit
              _
            loop: start=0, step=1, limit=1
            $region36: #{a_call__.5} parent=27 // loop_pre_header
              _
            $region37: #{a_call__.5} parent=27 // loop_header
              %s70 = sphi 0, %s74
              %p71 = scmp.ge.s32.totalorder %s70, 1
              %s75 = sphi %s0, %s0
              %s76 = sphi [#allocation2], [#allocation2]
            $region38: #{a_call__.5} parent=27 // loop_header_branch
              %73 = sbr.rel (%p71) target = $region42
            $region39: #{a_call__.5} parent=27 // loop_body
              %v77 = vld [vmem:[%s75] sm:$0xf]
              %78 = vst [vmem:[%s76] sm:$0xf] %v77
              %v79 = vld [vmem:[%s75 + $0x8] sm:$0xf]
              %80 = vst [vmem:[%s76 + $0x4] sm:$0xf] %v79
              %v81 = vld [vmem:[%s75 + $0x10] sm:$0xf]
              %82 = vst [vmem:[%s76 + $0x8] sm:$0xf] %v81
              %v83 = vld [vmem:[%s75 + $0x18] sm:$0xf]
              %84 = vst [vmem:[%s76 + $0xc] sm:$0xf] %v83
              %v85 = vld [vmem:[%s75 + $0x20] sm:$0xf]
              %86 = vst [vmem:[%s76 + $0x10] sm:$0xf] %v85
              %v87 = vld [vmem:[%s75 + $0x28] sm:$0xf]
              %88 = vst [vmem:[%s76 + $0x14] sm:$0xf] %v87
              %v89 = vld [vmem:[%s75 + $0x30] sm:$0xf]
              %90 = vst [vmem:[%s76 + $0x18] sm:$0xf] %v89
              %v91 = vld [vmem:[%s75 + $0x38] sm:$0xf]
              %92 = vst [vmem:[%s76 + $0x1c] sm:$0xf] %v91
              %v93 = vld [vmem:[%s75 + $0x40] sm:$0xf]
              %94 = vst [vmem:[%s76 + $0x20] sm:$0xf] %v93
              %v95 = vld [vmem:[%s75 + $0x48] sm:$0xf]
              %96 = vst [vmem:[%s76 + $0x24] sm:$0xf] %v95
              %v97 = vld [vmem:[%s75 + $0x50] sm:$0xf]
              %98 = vst [vmem:[%s76 + $0x28] sm:$0xf] %v97
              %v99 = vld [vmem:[%s75 + $0x58] sm:$0xf]
              %100 = vst [vmem:[%s76 + $0x2c] sm:$0xf] %v99
              %v101 = vld [vmem:[%s75 + $0x60] sm:$0xf]
              %102 = vst [vmem:[%s76 + $0x30] sm:$0xf] %v101
              %v103 = vld [vmem:[%s75 + $0x68] sm:$0xf]
              %104 = vst [vmem:[%s76 + $0x34] sm:$0xf] %v103
              %v105 = vld [vmem:[%s75 + $0x70] sm:$0xf]
              %106 = vst [vmem:[%s76 + $0x38] sm:$0xf] %v105
              %v107 = vld [vmem:[%s75 + $0x78] sm:$0xf]
              %108 = vst [vmem:[%s76 + $0x3c] sm:$0xf] %v107
            $region40: #{a_call__.5} parent=27 // loop_footer
              %s74 = sadd.s32 1, %s70
            $region41: #{a_call__.5} parent=27 // loop_footer_branch
              %69 = sbr.rel target = $region37
            $region42: #{a_call__.5} parent=27 // loop_exit
              _
          $region28: #{a_call__.5} parent=12 // pred_fallthru
            _
        $region13: #{a_call__.5} parent=8 // pred_fallthru
          _
        // Predicated region
        $region14: #{a_call__.5} parent=8 // pred_check
          _
        $region15: #{a_call__.5} parent=8 // pred_check_branch
          %16 = sbr.rel (0) target = $region17
        $region16: #{a_call__.5} parent=8 // pred_region
          loop: start=0, step=1, limit=1
          $region18: #{a_call__.5} parent=16 // loop_pre_header
            _
          $region19: #{a_call__.5} parent=16 // loop_header
            %s19 = sphi 0, %s23
            %p20 = scmp.ge.s32.totalorder %s19, 1
            %s24 = sphi %s0, %s0
            %s25 = sphi [#allocation2], [#allocation2]
          $region20: #{a_call__.5} parent=16 // loop_header_branch
            %22 = sbr.rel (%p20) target = $region24
          $region21: #{a_call__.5} parent=16 // loop_body
            %v26 = vld [vmem:[%s24] sm:$0xf]
            %27 = vst [vmem:[%s25] sm:$0xf] %v26
            %v28 = vld [vmem:[%s24 + $0x8] sm:$0xf]
            %29 = vst [vmem:[%s25 + $0x4] sm:$0xf] %v28
            %v30 = vld [vmem:[%s24 + $0x10] sm:$0xf]
            %31 = vst [vmem:[%s25 + $0x8] sm:$0xf] %v30
            %v32 = vld [vmem:[%s24 + $0x18] sm:$0xf]
            %33 = vst [vmem:[%s25 + $0xc] sm:$0xf] %v32
            %v34 = vld [vmem:[%s24 + $0x20] sm:$0xf]
            %35 = vst [vmem:[%s25 + $0x10] sm:$0xf] %v34
            %v36 = vld [vmem:[%s24 + $0x28] sm:$0xf]
            %37 = vst [vmem:[%s25 + $0x14] sm:$0xf] %v36
            %v38 = vld [vmem:[%s24 + $0x30] sm:$0xf]
            %39 = vst [vmem:[%s25 + $0x18] sm:$0xf] %v38
            %v40 = vld [vmem:[%s24 + $0x38] sm:$0xf]
            %41 = vst [vmem:[%s25 + $0x1c] sm:$0xf] %v40
            %v42 = vld [vmem:[%s24 + $0x40] sm:$0xf]
            %43 = vst [vmem:[%s25 + $0x20] sm:$0xf] %v42
            %v44 = vld [vmem:[%s24 + $0x48] sm:$0xf]
            %45 = vst [vmem:[%s25 + $0x24] sm:$0xf] %v44
            %v46 = vld [vmem:[%s24 + $0x50] sm:$0xf]
            %47 = vst [vmem:[%s25 + $0x28] sm:$0xf] %v46
            %v48 = vld [vmem:[%s24 + $0x58] sm:$0xf]
            %49 = vst [vmem:[%s25 + $0x2c] sm:$0xf] %v48
            %v50 = vld [vmem:[%s24 + $0x60] sm:$0xf]
            %51 = vst [vmem:[%s25 + $0x30] sm:$0xf] %v50
            %v52 = vld [vmem:[%s24 + $0x68] sm:$0xf]
            %53 = vst [vmem:[%s25 + $0x34] sm:$0xf] %v52
            %v54 = vld [vmem:[%s24 + $0x70] sm:$0xf]
            %55 = vst [vmem:[%s25 + $0x38] sm:$0xf] %v54
            %v56 = vld [vmem:[%s24 + $0x78] sm:$0xf]
            %57 = vst [vmem:[%s25 + $0x3c] sm:$0xf] %v56
          $region22: #{a_call__.5} parent=16 // loop_footer
            %s23 = sadd.s32 1, %s19
          $region23: #{a_call__.5} parent=16 // loop_footer_branch
            %18 = sbr.rel target = $region19
          $region24: #{a_call__.5} parent=16 // loop_exit
            _
        $region17: #{a_call__.5} parent=8 // pred_fallthru
          _
      $region9: #{a_call__.5} parent=4 // pred_fallthru
        _
      %109 = vnop
    $region5: #{a_call__.5} parent=1 // pred_fallthru
      _
    // Predicated region
    $region43: #{a_call__.5} parent=1 // pred_check
      _
    $region44: #{a_call__.5} parent=1 // pred_check_branch
      %111 = sbr.rel (0) target = $region46
    $region45: #{a_call__.5} parent=1 // pred_region
      _
    $region46: #{a_call__.5} parent=1 // pred_fallthru
      _
    // Predicated region
    $region47: #{a_call__.5} parent=1 // pred_check
      _
    $region48: #{a_call__.5} parent=1 // pred_check_branch
      %113 = sbr.rel (0) target = $region50
    $region49: #{a_call__.5} parent=1 // pred_region
      _
    $region50: #{a_call__.5} parent=1 // pred_fallthru
      _
    // Predicated region
    $region51: #{a_call__.5} parent=1 // pred_check
      _
    $region52: #{a_call__.5} parent=1 // pred_check_branch
      %115 = sbr.rel (0) target = $region54
    $region53: #{a_call__.5} parent=1 // pred_region
      _
    $region54: #{a_call__.5} parent=1 // pred_fallthru
      _
    // Predicated region
    $region55: #{a_call__.5} parent=1 // pred_check
      _
    $region56: #{a_call__.5} parent=1 // pred_check_branch
      %117 = sbr.rel (0) target = $region58
    $region57: #{a_call__.5} parent=1 // pred_region
      _
    $region58: #{a_call__.5} parent=1 // pred_fallthru
      _
    %v118 = vld [vmem:[%s1] sm:$0xff]
    %v119 = vld [vmem:[%s2] sm:$0x1]
    %v120 = vld [vmem:[%s3] sm:$0x1]
    %v121 = vmul.f32 %v118, 0.0078125
    %v122 = vmul.f32 %v121, %v121
    %v124 = vrot.slane %v122, 7
    %v126 = vsub.f32 %v121, %v124
    %v127 = vmax.f32 %v126, 0.0
    %v128 = vadd.f32 %v127, 1e-05
    %v129 = vrsqrt.pop %v128
    %v132 = vunpack.c.l.s4 1966171168
    %v133 = vunpack.c.0.s8 %v132
    %v134 = vlaneseq
    %v135 = vshrl.u32 %v134, 7
    %v136 = vsub.s32 %v133, %v135
    %v137 = vrot.slane %v129, %v136
    %v138 = vcombine.high %v137, %v137
    %v140 = vunpack.c.l.s4 1966171168
    %v141 = vunpack.c.0.s8 %v140
    %v142 = vlaneseq
    %v143 = vshrl.u32 %v142, 7
    %v144 = vsub.s32 %v141, %v143
    %v145 = vrot.slane %v138, %v144
    %v147 = vmul.f32 %v119, %v145
    %v148 = vmul.f32 %v121, %v147
    %v149 = vsub.f32 %v120, %v148
    %v150 = vld [vmem:[#allocation2] sm:$0xf]
    %v151 = vld [vmem:[#allocation2 + $0x4] sm:$0xf]
    %v152 = vld [vmem:[#allocation2 + $0x8] sm:$0xf]
    %v153 = vld [vmem:[#allocation2 + $0xc] sm:$0xf]
    %v154 = vld [vmem:[#allocation2 + $0x10] sm:$0xf]
    %v155 = vld [vmem:[#allocation2 + $0x14] sm:$0xf]
    %v156 = vld [vmem:[#allocation2 + $0x18] sm:$0xf]
    %v157 = vld [vmem:[#allocation2 + $0x1c] sm:$0xf]
    %v158 = vld [vmem:[#allocation2 + $0x20] sm:$0xf]
    %v159 = vld [vmem:[#allocation2 + $0x24] sm:$0xf]
    %v160 = vld [vmem:[#allocation2 + $0x28] sm:$0xf]
    %v161 = vld [vmem:[#allocation2 + $0x2c] sm:$0xf]
    %v162 = vld [vmem:[#allocation2 + $0x30] sm:$0xf]
    %v163 = vld [vmem:[#allocation2 + $0x34] sm:$0xf]
    %v164 = vld [vmem:[#allocation2 + $0x38] sm:$0xf]
    %v165 = vld [vmem:[#allocation2 + $0x3c] sm:$0xf]
    %v166 = vunpack.c.l.bf16 %v150
    %v167 = vunpack.c.l.bf16 %v151
    %v168 = vunpack.c.l.bf16 %v152
    %v169 = vunpack.c.l.bf16 %v153
    %v170 = vunpack.c.l.bf16 %v154
    %v171 = vunpack.c.l.bf16 %v155
    %v172 = vunpack.c.l.bf16 %v156
    %v173 = vunpack.c.l.bf16 %v157
    %v174 = vunpack.c.l.bf16 %v158
    %v175 = vunpack.c.l.bf16 %v159
    %v176 = vunpack.c.l.bf16 %v160
    %v177 = vunpack.c.l.bf16 %v161
    %v178 = vunpack.c.l.bf16 %v162
    %v179 = vunpack.c.l.bf16 %v163
    %v180 = vunpack.c.l.bf16 %v164
    %v181 = vunpack.c.l.bf16 %v165
    %v183 = vlaneseq
    %v184 = vshrl.u32 %v183, 7
    %v185 = vsub.s32 0, %v184
    %v186 = vrot.slane %v147, %v185
    %v188 = vmul.f32 %v166, %v186
    %v189 = vmul.f32 %v167, %v186
    %v190 = vmul.f32 %v168, %v186
    %v191 = vmul.f32 %v169, %v186
    %v192 = vmul.f32 %v170, %v186
    %v193 = vmul.f32 %v171, %v186
    %v194 = vmul.f32 %v172, %v186
    %v195 = vmul.f32 %v173, %v186
    %v196 = vmul.f32 %v174, %v186
    %v197 = vmul.f32 %v175, %v186
    %v198 = vmul.f32 %v176, %v186
    %v199 = vmul.f32 %v177, %v186
    %v200 = vmul.f32 %v178, %v186
    %v201 = vmul.f32 %v179, %v186
    %v202 = vmul.f32 %v180, %v186
    %v203 = vmul.f32 %v181, %v186
    %v205 = vlaneseq
    %v206 = vshrl.u32 %v205, 7
    %v207 = vsub.s32 0, %v206
    %v208 = vrot.slane %v149, %v207
    %v210 = vadd.f32 %v188, %v208
    %v211 = vadd.f32 %v189, %v208
    %v212 = vadd.f32 %v190, %v208
    %v213 = vadd.f32 %v191, %v208
    %v214 = vadd.f32 %v192, %v208
    %v215 = vadd.f32 %v193, %v208
    %v216 = vadd.f32 %v194, %v208
    %v217 = vadd.f32 %v195, %v208
    %v218 = vadd.f32 %v196, %v208
    %v219 = vadd.f32 %v197, %v208
    %v220 = vadd.f32 %v198, %v208
    %v221 = vadd.f32 %v199, %v208
    %v222 = vadd.f32 %v200, %v208
    %v223 = vadd.f32 %v201, %v208
    %v224 = vadd.f32 %v202, %v208
    %v225 = vadd.f32 %v203, %v208
    %v226 = vmax.f32 %v210, 0.0
    %v227 = vmax.f32 %v211, 0.0
    %v228 = vmax.f32 %v212, 0.0
    %v229 = vmax.f32 %v213, 0.0
    %v230 = vmax.f32 %v214, 0.0
    %v231 = vmax.f32 %v215, 0.0
    %v232 = vmax.f32 %v216, 0.0
    %v233 = vmax.f32 %v217, 0.0
    %v234 = vmax.f32 %v218, 0.0
    %v235 = vmax.f32 %v219, 0.0
    %v236 = vmax.f32 %v220, 0.0
    %v237 = vmax.f32 %v221, 0.0
    %v238 = vmax.f32 %v222, 0.0
    %v239 = vmax.f32 %v223, 0.0
    %v240 = vmax.f32 %v224, 0.0
    %v241 = vmax.f32 %v225, 0.0
    %v242 = vpack.c.bf16 %v227, %v226
    %v243 = vpack.c.bf16 %v229, %v228
    %v244 = vpack.c.bf16 %v231, %v230
    %v245 = vpack.c.bf16 %v233, %v232
    %v246 = vpack.c.bf16 %v235, %v234
    %v247 = vpack.c.bf16 %v237, %v236
    %v248 = vpack.c.bf16 %v239, %v238
    %v249 = vpack.c.bf16 %v241, %v240
    %v258 = vunpack.c.l.b16 %v242
    %v259 = vunpack.c.h.b16 %v242
    %v260 = vunpack.c.l.b16 %v243
    %v261 = vunpack.c.h.b16 %v243
    %v262 = vunpack.c.l.b16 %v244
    %v263 = vunpack.c.h.b16 %v244
    %v264 = vunpack.c.l.b16 %v245
    %v265 = vunpack.c.h.b16 %v245
    %v266 = vunpack.c.l.b16 %v246
    %v267 = vunpack.c.h.b16 %v246
    %v268 = vunpack.c.l.b16 %v247
    %v269 = vunpack.c.h.b16 %v247
    %v270 = vunpack.c.l.b16 %v248
    %v271 = vunpack.c.h.b16 %v248
    %v272 = vunpack.c.l.b16 %v249
    %v273 = vunpack.c.h.b16 %v249
    %v274 = vpack.c.b16 %v258, %v258
    %v275 = vpack.c.b16 %v259, %v259
    %v276 = vpack.c.b16 %v260, %v260
    %v277 = vpack.c.b16 %v261, %v261
    %v278 = vpack.c.b16 %v262, %v262
    %v279 = vpack.c.b16 %v263, %v263
    %v280 = vpack.c.b16 %v264, %v264
    %v281 = vpack.c.b16 %v265, %v265
    %v282 = vpack.c.b16 %v266, %v266
    %v283 = vpack.c.b16 %v267, %v267
    %v284 = vpack.c.b16 %v268, %v268
    %v285 = vpack.c.b16 %v269, %v269
    %v286 = vpack.c.b16 %v270, %v270
    %v287 = vpack.c.b16 %v271, %v271
    %v288 = vpack.c.b16 %v272, %v272
    %v289 = vpack.c.b16 %v273, %v273
    %306 = vst [vmem:[%s4] sm:$0xf] %v274
    %307 = vst [vmem:[%s4 + $0x4] sm:$0xf] %v275
    %308 = vst [vmem:[%s4 + $0x8] sm:$0xf] %v276
    %309 = vst [vmem:[%s4 + $0xc] sm:$0xf] %v277
    %310 = vst [vmem:[%s4 + $0x10] sm:$0xf] %v278
    %311 = vst [vmem:[%s4 + $0x14] sm:$0xf] %v279
    %312 = vst [vmem:[%s4 + $0x18] sm:$0xf] %v280
    %313 = vst [vmem:[%s4 + $0x1c] sm:$0xf] %v281
    %314 = vst [vmem:[%s4 + $0x20] sm:$0xf] %v282
    %315 = vst [vmem:[%s4 + $0x24] sm:$0xf] %v283
    %316 = vst [vmem:[%s4 + $0x28] sm:$0xf] %v284
    %317 = vst [vmem:[%s4 + $0x2c] sm:$0xf] %v285
    %318 = vst [vmem:[%s4 + $0x30] sm:$0xf] %v286
    %319 = vst [vmem:[%s4 + $0x34] sm:$0xf] %v287
    %320 = vst [vmem:[%s4 + $0x38] sm:$0xf] %v288
    %321 = vst [vmem:[%s4 + $0x3c] sm:$0xf] %v289
    // Predicated region
    $region59: #{a_call__.5} parent=1 // pred_check
      _
    $region60: #{a_call__.5} parent=1 // pred_check_branch
      %323 = sbr.rel (0) target = $region62
    $region61: #{a_call__.5} parent=1 // pred_region
      _
    $region62: #{a_call__.5} parent=1 // pred_fallthru
      _
    // Predicated region
    $region63: #{a_call__.5} parent=1 // pred_check
      _
    $region64: #{a_call__.5} parent=1 // pred_check_branch
      %325 = sbr.rel (0) target = $region66
    $region65: #{a_call__.5} parent=1 // pred_region
      _
    $region66: #{a_call__.5} parent=1 // pred_fallthru
      _

// kernel: a_call__.4
$region0: #{a_call__.4}
  #allocation0 [shape = 'u32[]', space=smem, size = 0x4, offset = 0x4, fixed_abs, tag = 'smem constant byte address 0x4 - core index']
  #allocation1 [shape = 'u32[144,128]{1,0:T(1,128)}', space=vmem, size = 0x12000, scoped, tag = 'internal scratch']
  %s0 = inlined_call_operand.vmem [shape: bf16[128,128], index: 0, kind: input, shape index: {}]
  %s1 = inlined_call_operand.vmem [shape: bf16[128,256], index: 1, kind: input, shape index: {}]
  %s2 = inlined_call_operand.vmem [shape: bf16[128,256], index: 2, kind: output, shape index: {0}]
  %s3 = inlined_call_operand.vmem [shape: f32[8,256], index: 3, kind: output, shape index: {1}]
  %4 = xla_tuple %s2, %s3
  %s5 = sld [smem:[#allocation0]]
  $region26: #{a_call__.4} parent=0
    _
  %s7 = ssub.s32 1, %s5
  %s8 = scalar_select 0, %s7, %s5
  // Predicated region
  $region2: #{a_call__.4} parent=0 // pred_check
    _
  $region3: #{a_call__.4} parent=0 // pred_check_branch
    %10 = sbr.rel (0) target = $region5
  $region4: #{a_call__.4} parent=0 // pred_region
    _
  $region5: #{a_call__.4} parent=0 // pred_fallthru
    _
  // Predicated region
  $region6: #{a_call__.4} parent=0 // pred_check
    _
  $region7: #{a_call__.4} parent=0 // pred_check_branch
    %12 = sbr.rel (0) target = $region9
  $region8: #{a_call__.4} parent=0 // pred_region
    _
  $region9: #{a_call__.4} parent=0 // pred_fallthru
    _
  %v14 = vld [vmem:[%s0] sm:$0xf]
  %v15 = vld [vmem:[%s0 + $0x4] sm:$0xf]
  %v16 = vld [vmem:[%s0 + $0x8] sm:$0xf]
  %v17 = vld [vmem:[%s0 + $0xc] sm:$0xf]
  %v18 = vld [vmem:[%s0 + $0x10] sm:$0xf]
  %v19 = vld [vmem:[%s0 + $0x14] sm:$0xf]
  %v20 = vld [vmem:[%s0 + $0x18] sm:$0xf]
  %v21 = vld [vmem:[%s0 + $0x1c] sm:$0xf]
  %v22 = vld [vmem:[%s0 + $0x20] sm:$0xf]
  %v23 = vld [vmem:[%s0 + $0x24] sm:$0xf]
  %v24 = vld [vmem:[%s0 + $0x28] sm:$0xf]
  %v25 = vld [vmem:[%s0 + $0x2c] sm:$0xf]
  %v26 = vld [vmem:[%s0 + $0x30] sm:$0xf]
  %v27 = vld [vmem:[%s0 + $0x34] sm:$0xf]
  %v28 = vld [vmem:[%s0 + $0x38] sm:$0xf]
  %v29 = vld [vmem:[%s0 + $0x3c] sm:$0xf]
  %v30 = vld [vmem:[%s1] sm:$0xff]
  %v31 = vld [vmem:[%s1 + $0x8] sm:$0xff]
  %v32 = vld [vmem:[%s1 + $0x10] sm:$0xff]
  %v33 = vld [vmem:[%s1 + $0x18] sm:$0xff]
  %v34 = vld [vmem:[%s1 + $0x20] sm:$0xff]
  %v35 = vld [vmem:[%s1 + $0x28] sm:$0xff]
  %v36 = vld [vmem:[%s1 + $0x30] sm:$0xff]
  %v37 = vld [vmem:[%s1 + $0x38] sm:$0xff]
  %v38 = vld [vmem:[%s1 + $0x40] sm:$0xff]
  %v39 = vld [vmem:[%s1 + $0x48] sm:$0xff]
  %v40 = vld [vmem:[%s1 + $0x50] sm:$0xff]
  %v41 = vld [vmem:[%s1 + $0x58] sm:$0xff]
  %v42 = vld [vmem:[%s1 + $0x60] sm:$0xff]
  %v43 = vld [vmem:[%s1 + $0x68] sm:$0xff]
  %v44 = vld [vmem:[%s1 + $0x70] sm:$0xff]
  %v45 = vld [vmem:[%s1 + $0x78] sm:$0xff]
  %v62 = vunpack.c.l.b16 %v14
  %v63 = vunpack.c.l.b16 %v15
  %v64 = vunpack.c.l.b16 %v16
  %v65 = vunpack.c.l.b16 %v17
  %v66 = vunpack.c.l.b16 %v18
  %v67 = vunpack.c.l.b16 %v19
  %v68 = vunpack.c.l.b16 %v20
  %v69 = vunpack.c.l.b16 %v21
  %v70 = vunpack.c.l.b16 %v22
  %v71 = vunpack.c.l.b16 %v23
  %v72 = vunpack.c.l.b16 %v24
  %v73 = vunpack.c.l.b16 %v25
  %v74 = vunpack.c.l.b16 %v26
  %v75 = vunpack.c.l.b16 %v27
  %v76 = vunpack.c.l.b16 %v28
  %v77 = vunpack.c.l.b16 %v29
  %v78 = vpack.c.b16 %v63, %v62
  %v79 = vpack.c.b16 %v65, %v64
  %v80 = vpack.c.b16 %v67, %v66
  %v81 = vpack.c.b16 %v69, %v68
  %v82 = vpack.c.b16 %v71, %v70
  %v83 = vpack.c.b16 %v73, %v72
  %v84 = vpack.c.b16 %v75, %v74
  %v85 = vpack.c.b16 %v77, %v76
  %v110 = vunpack.c.l.b16 %v30
  %v111 = vunpack.c.h.b16 %v30
  %v112 = vunpack.c.l.b16 %v31
  %v113 = vunpack.c.h.b16 %v31
  %v114 = vunpack.c.l.b16 %v32
  %v115 = vunpack.c.h.b16 %v32
  %v116 = vunpack.c.l.b16 %v33
  %v117 = vunpack.c.h.b16 %v33
  %v118 = vunpack.c.l.b16 %v34
  %v119 = vunpack.c.h.b16 %v34
  %v120 = vunpack.c.l.b16 %v35
  %v121 = vunpack.c.h.b16 %v35
  %v122 = vunpack.c.l.b16 %v36
  %v123 = vunpack.c.h.b16 %v36
  %v124 = vunpack.c.l.b16 %v37
  %v125 = vunpack.c.h.b16 %v37
  %v126 = vunpack.c.l.b16 %v38
  %v127 = vunpack.c.h.b16 %v38
  %v128 = vunpack.c.l.b16 %v39
  %v129 = vunpack.c.h.b16 %v39
  %v130 = vunpack.c.l.b16 %v40
  %v131 = vunpack.c.h.b16 %v40
  %v132 = vunpack.c.l.b16 %v41
  %v133 = vunpack.c.h.b16 %v41
  %v134 = vunpack.c.l.b16 %v42
  %v135 = vunpack.c.h.b16 %v42
  %v136 = vunpack.c.l.b16 %v43
  %v137 = vunpack.c.h.b16 %v43
  %v138 = vunpack.c.l.b16 %v44
  %v139 = vunpack.c.h.b16 %v44
  %v140 = vunpack.c.l.b16 %v45
  %v141 = vunpack.c.h.b16 %v45
  %v142 = vpack.c.b16 %v112, %v110
  %v143 = vpack.c.b16 %v113, %v111
  %v144 = vpack.c.b16 %v116, %v114
  %v145 = vpack.c.b16 %v117, %v115
  %v146 = vpack.c.b16 %v120, %v118
  %v147 = vpack.c.b16 %v121, %v119
  %v148 = vpack.c.b16 %v124, %v122
  %v149 = vpack.c.b16 %v125, %v123
  %v150 = vpack.c.b16 %v128, %v126
  %v151 = vpack.c.b16 %v129, %v127
  %v152 = vpack.c.b16 %v132, %v130
  %v153 = vpack.c.b16 %v133, %v131
  %v154 = vpack.c.b16 %v136, %v134
  %v155 = vpack.c.b16 %v137, %v135
  %v156 = vpack.c.b16 %v140, %v138
  %v157 = vpack.c.b16 %v141, %v139
  %174 = vmatprep.subr.bf16.mxu0 %v143
  %175 = vmatpush1.bf16.msra.mxu0 %v142
  %176 = vmatprep.subr.bf16.mxu0 %v145
  %177 = vmatpush1.bf16.msra.mxu0 %v144
  %178 = vmatprep.subr.bf16.mxu0 %v147
  %179 = vmatpush1.bf16.msra.mxu0 %v146
  %180 = vmatprep.subr.bf16.mxu0 %v149
  %181 = vmatpush1.bf16.msra.mxu0 %v148
  %182 = vmatprep.subr.bf16.mxu0 %v151
  %183 = vmatpush1.bf16.msra.mxu0 %v150
  %184 = vmatprep.subr.bf16.mxu0 %v153
  %185 = vmatpush1.bf16.msra.mxu0 %v152
  %186 = vmatprep.subr.bf16.mxu0 %v155
  %187 = vmatpush1.bf16.msra.mxu0 %v154
  %188 = vmatprep.subr.bf16.mxu0 %v157
  %189 = vmatpush1.bf16.msra.mxu0 %v156
  %190 = vmatprep.subr.bf16.mxu0 0
  %191 = vmatpush1.bf16.msra.mxu0 0
  %192 = vmatprep.subr.bf16.mxu0 0
  %193 = vmatpush1.bf16.msra.mxu0 0
  %194 = vmatprep.subr.bf16.mxu0 0
  %195 = vmatpush1.bf16.msra.mxu0 0
  %196 = vmatprep.subr.bf16.mxu0 0
  %197 = vmatpush1.bf16.msra.mxu0 0
  %198 = vmatprep.subr.bf16.mxu0 0
  %199 = vmatpush1.bf16.msra.mxu0 0
  %200 = vmatprep.subr.bf16.mxu0 0
  %201 = vmatpush1.bf16.msra.mxu0 0
  %202 = vmatprep.subr.bf16.mxu0 0
  %203 = vmatpush1.bf16.msra.mxu0 0
  %204 = vmatprep.subr.bf16.mxu0 0
  %205 = vmatpush1.bf16.msra.mxu0 0
  %206 = vmatprep.mubr.bf16.mxu0 0
  %207 = vmatmul.mubr.bf16.gmra.mrb[0].mxu0 %v78
  %v208 = vpop.f32.mrb[0].mxu0
  %v209 = vadd.f32 0.0, %v208
  %v210 = vpop.f32.mrb[0].mxu0
  %v211 = vadd.f32 0.0, %v210
  %v212 = vpop.f32.mrb[0].mxu0
  %v213 = vadd.f32 0.0, %v212
  %v214 = vpop.f32.mrb[0].mxu0
  %v215 = vadd.f32 0.0, %v214
  %216 = vmatprep.mubr.bf16.mxu0 0
  %217 = vmatmul.mubr.bf16.gmra.mrb[0].mxu0 %v79
  %v218 = vpop.f32.mrb[0].mxu0
  %v219 = vadd.f32 0.0, %v218
  %v220 = vpop.f32.mrb[0].mxu0
  %v221 = vadd.f32 0.0, %v220
  %v222 = vpop.f32.mrb[0].mxu0
  %v223 = vadd.f32 0.0, %v222
  %v224 = vpop.f32.mrb[0].mxu0
  %v225 = vadd.f32 0.0, %v224
  %226 = vmatprep.mubr.bf16.mxu0 0
  %227 = vmatmul.mubr.bf16.gmra.mrb[0].mxu0 %v80
  %v228 = vpop.f32.mrb[0].mxu0
  %v229 = vadd.f32 0.0, %v228
  %v230 = vpop.f32.mrb[0].mxu0
  %v231 = vadd.f32 0.0, %v230
  %v232 = vpop.f32.mrb[0].mxu0
  %v233 = vadd.f32 0.0, %v232
  %v234 = vpop.f32.mrb[0].mxu0
  %v235 = vadd.f32 0.0, %v234
  %236 = vmatprep.mubr.bf16.mxu0 0
  %237 = vmatmul.mubr.bf16.gmra.mrb[0].mxu0 %v81
  %v238 = vpop.f32.mrb[0].mxu0
  %v239 = vadd.f32 0.0, %v238
  %v240 = vpop.f32.mrb[0].mxu0
  %v241 = vadd.f32 0.0, %v240
  %v242 = vpop.f32.mrb[0].mxu0
  %v243 = vadd.f32 0.0, %v242
  %v244 = vpop.f32.mrb[0].mxu0
  %v245 = vadd.f32 0.0, %v244
  %246 = vmatprep.mubr.bf16.mxu0 0
  %247 = vmatmul.mubr.bf16.gmra.mrb[0].mxu0 %v82
  %v248 = vpop.f32.mrb[0].mxu0
  %v249 = vadd.f32 0.0, %v248
  %v250 = vpop.f32.mrb[0].mxu0
  %v251 = vadd.f32 0.0, %v250
  %v252 = vpop.f32.mrb[0].mxu0
  %v253 = vadd.f32 0.0, %v252
  %v254 = vpop.f32.mrb[0].mxu0
  %v255 = vadd.f32 0.0, %v254
  %256 = vmatprep.mubr.bf16.mxu0 0
  %257 = vmatmul.mubr.bf16.gmra.mrb[0].mxu0 %v83
  %v258 = vpop.f32.mrb[0].mxu0
  %v259 = vadd.f32 0.0, %v258
  %v260 = vpop.f32.mrb[0].mxu0
  %v261 = vadd.f32 0.0, %v260
  %v262 = vpop.f32.mrb[0].mxu0
  %v263 = vadd.f32 0.0, %v262
  %v264 = vpop.f32.mrb[0].mxu0
  %v265 = vadd.f32 0.0, %v264
  %266 = vmatprep.mubr.bf16.mxu0 0
  %267 = vmatmul.mubr.bf16.gmra.mrb[0].mxu0 %v84
  %v268 = vpop.f32.mrb[0].mxu0
  %v269 = vadd.f32 0.0, %v268
  %v270 = vpop.f32.mrb[0].mxu0
  %v271 = vadd.f32 0.0, %v270
  %v272 = vpop.f32.mrb[0].mxu0
  %v273 = vadd.f32 0.0, %v272
  %v274 = vpop.f32.mrb[0].mxu0
  %v275 = vadd.f32 0.0, %v274
  %276 = vmatprep.mubr.bf16.mxu0 0
  %277 = vmatmul.mubr.bf16.gmra.mrb[0].mxu0 %v85
  %v278 = vpop.f32.mrb[0].mxu0
  %v279 = vadd.f32 0.0, %v278
  %v280 = vpop.f32.mrb[0].mxu0
  %v281 = vadd.f32 0.0, %v280
  %v282 = vpop.f32.mrb[0].mxu0
  %v283 = vadd.f32 0.0, %v282
  %v284 = vpop.f32.mrb[0].mxu0
  %v285 = vadd.f32 0.0, %v284
  %286 = vdwg.mxu0
  %v287 = vpack.c.bf16 %v213, %v209
  %v288 = vpack.c.bf16 %v215, %v211
  %v289 = vpack.c.bf16 %v223, %v219
  %v290 = vpack.c.bf16 %v225, %v221
  %v291 = vpack.c.bf16 %v233, %v229
  %v292 = vpack.c.bf16 %v235, %v231
  %v293 = vpack.c.bf16 %v243, %v239
  %v294 = vpack.c.bf16 %v245, %v241
  %v295 = vpack.c.bf16 %v253, %v249
  %v296 = vpack.c.bf16 %v255, %v251
  %v297 = vpack.c.bf16 %v263, %v259
  %v298 = vpack.c.bf16 %v265, %v261
  %v299 = vpack.c.bf16 %v273, %v269
  %v300 = vpack.c.bf16 %v275, %v271
  %v301 = vpack.c.bf16 %v283, %v279
  %v302 = vpack.c.bf16 %v285, %v281
  %v319 = vunpack.c.l.b16 %v287
  %v320 = vunpack.c.l.b16 %v288
  %v321 = vunpack.c.h.b16 %v287
  %v322 = vunpack.c.h.b16 %v288
  %v323 = vunpack.c.l.b16 %v289
  %v324 = vunpack.c.l.b16 %v290
  %v325 = vunpack.c.h.b16 %v289
  %v326 = vunpack.c.h.b16 %v290
  %v327 = vunpack.c.l.b16 %v291
  %v328 = vunpack.c.l.b16 %v292
  %v329 = vunpack.c.h.b16 %v291
  %v330 = vunpack.c.h.b16 %v292
  %v331 = vunpack.c.l.b16 %v293
  %v332 = vunpack.c.l.b16 %v294
  %v333 = vunpack.c.h.b16 %v293
  %v334 = vunpack.c.h.b16 %v294
  %v335 = vunpack.c.l.b16 %v295
  %v336 = vunpack.c.l.b16 %v296
  %v337 = vunpack.c.h.b16 %v295
  %v338 = vunpack.c.h.b16 %v296
  %v339 = vunpack.c.l.b16 %v297
  %v340 = vunpack.c.l.b16 %v298
  %v341 = vunpack.c.h.b16 %v297
  %v342 = vunpack.c.h.b16 %v298
  %v343 = vunpack.c.l.b16 %v299
  %v344 = vunpack.c.l.b16 %v300
  %v345 = vunpack.c.h.b16 %v299
  %v346 = vunpack.c.h.b16 %v300
  %v347 = vunpack.c.l.b16 %v301
  %v348 = vunpack.c.l.b16 %v302
  %v349 = vunpack.c.h.b16 %v301
  %v350 = vunpack.c.h.b16 %v302
  %v351 = vpack.c.b16 %v320, %v319
  %v352 = vpack.c.b16 %v322, %v321
  %v353 = vpack.c.b16 %v324, %v323
  %v354 = vpack.c.b16 %v326, %v325
  %v355 = vpack.c.b16 %v328, %v327
  %v356 = vpack.c.b16 %v330, %v329
  %v357 = vpack.c.b16 %v332, %v331
  %v358 = vpack.c.b16 %v334, %v333
  %v359 = vpack.c.b16 %v336, %v335
  %v360 = vpack.c.b16 %v338, %v337
  %v361 = vpack.c.b16 %v340, %v339
  %v362 = vpack.c.b16 %v342, %v341
  %v363 = vpack.c.b16 %v344, %v343
  %v364 = vpack.c.b16 %v346, %v345
  %v365 = vpack.c.b16 %v348, %v347
  %v366 = vpack.c.b16 %v350, %v349
  %383 = vst [vmem:[%s2] sm:$0xff] %v351
  %384 = vst [vmem:[%s2 + $0x8] sm:$0xff] %v352
  %385 = vst [vmem:[%s2 + $0x10] sm:$0xff] %v353
  %386 = vst [vmem:[%s2 + $0x18] sm:$0xff] %v354
  %387 = vst [vmem:[%s2 + $0x20] sm:$0xff] %v355
  %388 = vst [vmem:[%s2 + $0x28] sm:$0xff] %v356
  %389 = vst [vmem:[%s2 + $0x30] sm:$0xff] %v357
  %390 = vst [vmem:[%s2 + $0x38] sm:$0xff] %v358
  %391 = vst [vmem:[%s2 + $0x40] sm:$0xff] %v359
  %392 = vst [vmem:[%s2 + $0x48] sm:$0xff] %v360
  %393 = vst [vmem:[%s2 + $0x50] sm:$0xff] %v361
  %394 = vst [vmem:[%s2 + $0x58] sm:$0xff] %v362
  %395 = vst [vmem:[%s2 + $0x60] sm:$0xff] %v363
  %396 = vst [vmem:[%s2 + $0x68] sm:$0xff] %v364
  %397 = vst [vmem:[%s2 + $0x70] sm:$0xff] %v365
  %398 = vst [vmem:[%s2 + $0x78] sm:$0xff] %v366
  %v399 = vadd.f32 %v209, %v213
  %v400 = vadd.f32 %v399, %v219
  %v401 = vadd.f32 %v400, %v223
  %v402 = vadd.f32 %v401, %v229
  %v403 = vadd.f32 %v402, %v233
  %v404 = vadd.f32 %v403, %v239
  %v405 = vadd.f32 %v404, %v243
  %v406 = vadd.f32 %v405, %v249
  %v407 = vadd.f32 %v406, %v253
  %v408 = vadd.f32 %v407, %v259
  %v409 = vadd.f32 %v408, %v263
  %v410 = vadd.f32 %v409, %v269
  %v411 = vadd.f32 %v410, %v273
  %v412 = vadd.f32 %v411, %v279
  %v413 = vadd.f32 %v412, %v283
  %v414 = vrot.slane %v413, 4
  %v415 = vadd.f32 %v413, %v414
  %v416 = vrot.slane %v415, 2
  %v417 = vadd.f32 %v415, %v416
  %v418 = vrot.slane %v417, 1
  %v419 = vadd.f32 %v417, %v418
  %v420 = vadd.f32 %v211, %v215
  %v421 = vadd.f32 %v420, %v221
  %v422 = vadd.f32 %v421, %v225
  %v423 = vadd.f32 %v422, %v231
  %v424 = vadd.f32 %v423, %v235
  %v425 = vadd.f32 %v424, %v241
  %v426 = vadd.f32 %v425, %v245
  %v427 = vadd.f32 %v426, %v251
  %v428 = vadd.f32 %v427, %v255
  %v429 = vadd.f32 %v428, %v261
  %v430 = vadd.f32 %v429, %v265
  %v431 = vadd.f32 %v430, %v271
  %v432 = vadd.f32 %v431, %v275
  %v433 = vadd.f32 %v432, %v281
  %v434 = vadd.f32 %v433, %v285
  %v435 = vrot.slane %v434, 4
  %v436 = vadd.f32 %v434, %v435
  %v437 = vrot.slane %v436, 2
  %v438 = vadd.f32 %v436, %v437
  %v439 = vrot.slane %v438, 1
  %v440 = vadd.f32 %v438, %v439
  %v441 = vmul.f32 %v209, %v209
  %v442 = vmul.f32 %v211, %v211
  %v443 = vmul.f32 %v213, %v213
  %v444 = vmul.f32 %v215, %v215
  %v445 = vmul.f32 %v219, %v219
  %v446 = vmul.f32 %v221, %v221
  %v447 = vmul.f32 %v223, %v223
  %v448 = vmul.f32 %v225, %v225
  %v449 = vmul.f32 %v229, %v229
  %v450 = vmul.f32 %v231, %v231
  %v451 = vmul.f32 %v233, %v233
  %v452 = vmul.f32 %v235, %v235
  %v453 = vmul.f32 %v239, %v239
  %v454 = vmul.f32 %v241, %v241
  %v455 = vmul.f32 %v243, %v243
  %v456 = vmul.f32 %v245, %v245
  %v457 = vmul.f32 %v249, %v249
  %v458 = vmul.f32 %v251, %v251
  %v459 = vmul.f32 %v253, %v253
  %v460 = vmul.f32 %v255, %v255
  %v461 = vmul.f32 %v259, %v259
  %v462 = vmul.f32 %v261, %v261
  %v463 = vmul.f32 %v263, %v263
  %v464 = vmul.f32 %v265, %v265
  %v465 = vmul.f32 %v269, %v269
  %v466 = vmul.f32 %v271, %v271
  %v467 = vmul.f32 %v273, %v273
  %v468 = vmul.f32 %v275, %v275
  %v469 = vmul.f32 %v279, %v279
  %v470 = vmul.f32 %v281, %v281
  %v471 = vmul.f32 %v283, %v283
  %v472 = vmul.f32 %v285, %v285
  %v473 = vadd.f32 %v441, %v443
  %v474 = vadd.f32 %v473, %v445
  %v475 = vadd.f32 %v474, %v447
  %v476 = vadd.f32 %v475, %v449
  %v477 = vadd.f32 %v476, %v451
  %v478 = vadd.f32 %v477, %v453
  %v479 = vadd.f32 %v478, %v455
  %v480 = vadd.f32 %v479, %v457
  %v481 = vadd.f32 %v480, %v459
  %v482 = vadd.f32 %v481, %v461
  %v483 = vadd.f32 %v482, %v463
  %v484 = vadd.f32 %v483, %v465
  %v485 = vadd.f32 %v484, %v467
  %v486 = vadd.f32 %v485, %v469
  %v487 = vadd.f32 %v486, %v471
  %v488 = vrot.slane %v487, 4
  %v489 = vadd.f32 %v487, %v488
  %v490 = vrot.slane %v489, 2
  %v491 = vadd.f32 %v489, %v490
  %v492 = vrot.slane %v491, 1
  %v493 = vadd.f32 %v491, %v492
  %v494 = vadd.f32 %v442, %v444
  %v495 = vadd.f32 %v494, %v446
  %v496 = vadd.f32 %v495, %v448
  %v497 = vadd.f32 %v496, %v450
  %v498 = vadd.f32 %v497, %v452
  %v499 = vadd.f32 %v498, %v454
  %v500 = vadd.f32 %v499, %v456
  %v501 = vadd.f32 %v500, %v458
  %v502 = vadd.f32 %v501, %v460
  %v503 = vadd.f32 %v502, %v462
  %v504 = vadd.f32 %v503, %v464
  %v505 = vadd.f32 %v504, %v466
  %v506 = vadd.f32 %v505, %v468
  %v507 = vadd.f32 %v506, %v470
  %v508 = vadd.f32 %v507, %v472
  %v509 = vrot.slane %v508, 4
  %v510 = vadd.f32 %v508, %v509
  %v511 = vrot.slane %v510, 2
  %v512 = vadd.f32 %v510, %v511
  %v513 = vrot.slane %v512, 1
  %v514 = vadd.f32 %v512, %v513
  %v515 = vlaneseq
  %v516 = vshrl.u32 %v515, 7
  %vm517 = vcmp.eq.s32.totalorder %v516, 0
  %v518 = vsel %vm517, %v419, 0.0
  %v519 = vsel %vm517, %v440, 0.0
  %vm520 = vcmp.eq.s32.totalorder %v516, 1
  %v521 = vsel %vm520, %v493, 0.0
  %v522 = vsel %vm520, %v514, 0.0
  %v523 = vadd.f32 %v518, %v521
  %v524 = vadd.f32 %v519, %v522
  %525 = vst [vmem:[%s3] sm:$0xff] %v523
  %526 = vst [vmem:[%s3 + $0x8] sm:$0xff] %v524
  // Predicated region
  $region10: #{a_call__.4} parent=0 // pred_check
    _
  $region11: #{a_call__.4} parent=0 // pred_check_branch
    %528 = sbr.rel (0) target = $region13
  $region12: #{a_call__.4} parent=0 // pred_region
    _
  $region13: #{a_call__.4} parent=0 // pred_fallthru
    _
  // Predicated region
  $region14: #{a_call__.4} parent=0 // pred_check
    _
  $region15: #{a_call__.4} parent=0 // pred_check_branch
    %530 = sbr.rel (0) target = $region17
  $region16: #{a_call__.4} parent=0 // pred_region
    _
  $region17: #{a_call__.4} parent=0 // pred_fallthru
    _
  // Predicated region
  $region18: #{a_call__.4} parent=0 // pred_check
    _
  $region19: #{a_call__.4} parent=0 // pred_check_branch
    %532 = sbr.rel (0) target = $region21
  $region20: #{a_call__.4} parent=0 // pred_region
    _
  $region21: #{a_call__.4} parent=0 // pred_fallthru
    _
  // Predicated region
  $region22: #{a_call__.4} parent=0 // pred_check
    _
  $region23: #{a_call__.4} parent=0 // pred_check_branch
    %534 = sbr.rel (0) target = $region25
  $region24: #{a_call__.4} parent=0 // pred_region
    _
  $region25: #{a_call__.4} parent=0 // pred_fallthru
    _

// kernel: a_call__.6
$region0: #{a_call__.6}
  #allocation0 [shape = 'u32[]', space=smem, size = 0x4, offset = 0x4, fixed_abs, tag = 'smem constant byte address 0x4 - core index']
  #allocation1 [shape = 'u32[144,128]{1,0:T(1,128)}', space=vmem, size = 0x12000, scoped, tag = 'internal scratch']
  %s0 = inlined_call_operand.vmem [shape: bf16[128,128], index: 0, kind: input, shape index: {}]
  %s1 = inlined_call_operand.vmem [shape: bf16[128,128], index: 1, kind: input, shape index: {}]
  %s2 = inlined_call_operand.vmem [shape: bf16[128,128], index: 2, kind: output, shape index: {0}]
  %s3 = inlined_call_operand.vmem [shape: f32[8,128], index: 3, kind: output, shape index: {1}]
  %4 = xla_tuple %s2, %s3
  %s5 = sld [smem:[#allocation0]]
  $region26: #{a_call__.6} parent=0
    _
  %s7 = ssub.s32 1, %s5
  %s8 = scalar_select 0, %s7, %s5
  // Predicated region
  $region2: #{a_call__.6} parent=0 // pred_check
    _
  $region3: #{a_call__.6} parent=0 // pred_check_branch
    %10 = sbr.rel (0) target = $region5
  $region4: #{a_call__.6} parent=0 // pred_region
    _
  $region5: #{a_call__.6} parent=0 // pred_fallthru
    _
  // Predicated region
  $region6: #{a_call__.6} parent=0 // pred_check
    _
  $region7: #{a_call__.6} parent=0 // pred_check_branch
    %12 = sbr.rel (0) target = $region9
  $region8: #{a_call__.6} parent=0 // pred_region
    _
  $region9: #{a_call__.6} parent=0 // pred_fallthru
    _
  %v14 = vld [vmem:[%s0] sm:$0xf]
  %v15 = vld [vmem:[%s0 + $0x4] sm:$0xf]
  %v16 = vld [vmem:[%s0 + $0x8] sm:$0xf]
  %v17 = vld [vmem:[%s0 + $0xc] sm:$0xf]
  %v18 = vld [vmem:[%s0 + $0x10] sm:$0xf]
  %v19 = vld [vmem:[%s0 + $0x14] sm:$0xf]
  %v20 = vld [vmem:[%s0 + $0x18] sm:$0xf]
  %v21 = vld [vmem:[%s0 + $0x1c] sm:$0xf]
  %v22 = vld [vmem:[%s0 + $0x20] sm:$0xf]
  %v23 = vld [vmem:[%s0 + $0x24] sm:$0xf]
  %v24 = vld [vmem:[%s0 + $0x28] sm:$0xf]
  %v25 = vld [vmem:[%s0 + $0x2c] sm:$0xf]
  %v26 = vld [vmem:[%s0 + $0x30] sm:$0xf]
  %v27 = vld [vmem:[%s0 + $0x34] sm:$0xf]
  %v28 = vld [vmem:[%s0 + $0x38] sm:$0xf]
  %v29 = vld [vmem:[%s0 + $0x3c] sm:$0xf]
  %v30 = vld [vmem:[%s1] sm:$0xf]
  %v31 = vld [vmem:[%s1 + $0x4] sm:$0xf]
  %v32 = vld [vmem:[%s1 + $0x8] sm:$0xf]
  %v33 = vld [vmem:[%s1 + $0xc] sm:$0xf]
  %v34 = vld [vmem:[%s1 + $0x10] sm:$0xf]
  %v35 = vld [vmem:[%s1 + $0x14] sm:$0xf]
  %v36 = vld [vmem:[%s1 + $0x18] sm:$0xf]
  %v37 = vld [vmem:[%s1 + $0x1c] sm:$0xf]
  %v38 = vld [vmem:[%s1 + $0x20] sm:$0xf]
  %v39 = vld [vmem:[%s1 + $0x24] sm:$0xf]
  %v40 = vld [vmem:[%s1 + $0x28] sm:$0xf]
  %v41 = vld [vmem:[%s1 + $0x2c] sm:$0xf]
  %v42 = vld [vmem:[%s1 + $0x30] sm:$0xf]
  %v43 = vld [vmem:[%s1 + $0x34] sm:$0xf]
  %v44 = vld [vmem:[%s1 + $0x38] sm:$0xf]
  %v45 = vld [vmem:[%s1 + $0x3c] sm:$0xf]
  %v62 = vunpack.c.l.b16 %v14
  %v63 = vunpack.c.l.b16 %v15
  %v64 = vunpack.c.l.b16 %v16
  %v65 = vunpack.c.l.b16 %v17
  %v66 = vunpack.c.l.b16 %v18
  %v67 = vunpack.c.l.b16 %v19
  %v68 = vunpack.c.l.b16 %v20
  %v69 = vunpack.c.l.b16 %v21
  %v70 = vunpack.c.l.b16 %v22
  %v71 = vunpack.c.l.b16 %v23
  %v72 = vunpack.c.l.b16 %v24
  %v73 = vunpack.c.l.b16 %v25
  %v74 = vunpack.c.l.b16 %v26
  %v75 = vunpack.c.l.b16 %v27
  %v76 = vunpack.c.l.b16 %v28
  %v77 = vunpack.c.l.b16 %v29
  %v78 = vpack.c.b16 %v63, %v62
  %v79 = vpack.c.b16 %v65, %v64
  %v80 = vpack.c.b16 %v67, %v66
  %v81 = vpack.c.b16 %v69, %v68
  %v82 = vpack.c.b16 %v71, %v70
  %v83 = vpack.c.b16 %v73, %v72
  %v84 = vpack.c.b16 %v75, %v74
  %v85 = vpack.c.b16 %v77, %v76
  %v110 = vunpack.c.l.b16 %v30
  %v111 = vunpack.c.l.b16 %v31
  %v112 = vunpack.c.l.b16 %v32
  %v113 = vunpack.c.l.b16 %v33
  %v114 = vunpack.c.l.b16 %v34
  %v115 = vunpack.c.l.b16 %v35
  %v116 = vunpack.c.l.b16 %v36
  %v117 = vunpack.c.l.b16 %v37
  %v118 = vunpack.c.l.b16 %v38
  %v119 = vunpack.c.l.b16 %v39
  %v120 = vunpack.c.l.b16 %v40
  %v121 = vunpack.c.l.b16 %v41
  %v122 = vunpack.c.l.b16 %v42
  %v123 = vunpack.c.l.b16 %v43
  %v124 = vunpack.c.l.b16 %v44
  %v125 = vunpack.c.l.b16 %v45
  %v126 = vpack.c.b16 %v111, %v110
  %v127 = vpack.c.b16 %v113, %v112
  %v128 = vpack.c.b16 %v115, %v114
  %v129 = vpack.c.b16 %v117, %v116
  %v130 = vpack.c.b16 %v119, %v118
  %v131 = vpack.c.b16 %v121, %v120
  %v132 = vpack.c.b16 %v123, %v122
  %v133 = vpack.c.b16 %v125, %v124
  %142 = vmatprep.subr.bf16.mxu0 0
  %143 = vmatpush1.bf16.msra.mxu0 %v126
  %144 = vmatprep.subr.bf16.mxu0 0
  %145 = vmatpush1.bf16.msra.mxu0 %v127
  %146 = vmatprep.subr.bf16.mxu0 0
  %147 = vmatpush1.bf16.msra.mxu0 %v128
  %148 = vmatprep.subr.bf16.mxu0 0
  %149 = vmatpush1.bf16.msra.mxu0 %v129
  %150 = vmatprep.subr.bf16.mxu0 0
  %151 = vmatpush1.bf16.msra.mxu0 %v130
  %152 = vmatprep.subr.bf16.mxu0 0
  %153 = vmatpush1.bf16.msra.mxu0 %v131
  %154 = vmatprep.subr.bf16.mxu0 0
  %155 = vmatpush1.bf16.msra.mxu0 %v132
  %156 = vmatprep.subr.bf16.mxu0 0
  %157 = vmatpush1.bf16.msra.mxu0 %v133
  %158 = vmatprep.subr.bf16.mxu0 0
  %159 = vmatpush1.bf16.msra.mxu0 0
  %160 = vmatprep.subr.bf16.mxu0 0
  %161 = vmatpush1.bf16.msra.mxu0 0
  %162 = vmatprep.subr.bf16.mxu0 0
  %163 = vmatpush1.bf16.msra.mxu0 0
  %164 = vmatprep.subr.bf16.mxu0 0
  %165 = vmatpush1.bf16.msra.mxu0 0
  %166 = vmatprep.subr.bf16.mxu0 0
  %167 = vmatpush1.bf16.msra.mxu0 0
  %168 = vmatprep.subr.bf16.mxu0 0
  %169 = vmatpush1.bf16.msra.mxu0 0
  %170 = vmatprep.subr.bf16.mxu0 0
  %171 = vmatpush1.bf16.msra.mxu0 0
  %172 = vmatprep.subr.bf16.mxu0 0
  %173 = vmatpush1.bf16.msra.mxu0 0
  %174 = vmatprep.mubr.bf16.mxu0 0
  %175 = vmatmul.mubr.bf16.gmra.mrb[0].mxu0 %v78
  %v176 = vpop.f32.mrb[0].mxu0
  %v177 = vadd.f32 0.0, %v176
  %v178 = vpop.f32.mrb[0].mxu0
  %v179 = vpop.f32.mrb[0].mxu0
  %v180 = vadd.f32 0.0, %v179
  %v181 = vpop.f32.mrb[0].mxu0
  %182 = vmatprep.mubr.bf16.mxu0 0
  %183 = vmatmul.mubr.bf16.gmra.mrb[0].mxu0 %v79
  %v184 = vpop.f32.mrb[0].mxu0
  %v185 = vadd.f32 0.0, %v184
  %v186 = vpop.f32.mrb[0].mxu0
  %v187 = vpop.f32.mrb[0].mxu0
  %v188 = vadd.f32 0.0, %v187
  %v189 = vpop.f32.mrb[0].mxu0
  %190 = vmatprep.mubr.bf16.mxu0 0
  %191 = vmatmul.mubr.bf16.gmra.mrb[0].mxu0 %v80
  %v192 = vpop.f32.mrb[0].mxu0
  %v193 = vadd.f32 0.0, %v192
  %v194 = vpop.f32.mrb[0].mxu0
  %v195 = vpop.f32.mrb[0].mxu0
  %v196 = vadd.f32 0.0, %v195
  %v197 = vpop.f32.mrb[0].mxu0
  %198 = vmatprep.mubr.bf16.mxu0 0
  %199 = vmatmul.mubr.bf16.gmra.mrb[0].mxu0 %v81
  %v200 = vpop.f32.mrb[0].mxu0
  %v201 = vadd.f32 0.0, %v200
  %v202 = vpop.f32.mrb[0].mxu0
  %v203 = vpop.f32.mrb[0].mxu0
  %v204 = vadd.f32 0.0, %v203
  %v205 = vpop.f32.mrb[0].mxu0
  %206 = vmatprep.mubr.bf16.mxu0 0
  %207 = vmatmul.mubr.bf16.gmra.mrb[0].mxu0 %v82
  %v208 = vpop.f32.mrb[0].mxu0
  %v209 = vadd.f32 0.0, %v208
  %v210 = vpop.f32.mrb[0].mxu0
  %v211 = vpop.f32.mrb[0].mxu0
  %v212 = vadd.f32 0.0, %v211
  %v213 = vpop.f32.mrb[0].mxu0
  %214 = vmatprep.mubr.bf16.mxu0 0
  %215 = vmatmul.mubr.bf16.gmra.mrb[0].mxu0 %v83
  %v216 = vpop.f32.mrb[0].mxu0
  %v217 = vadd.f32 0.0, %v216
  %v218 = vpop.f32.mrb[0].mxu0
  %v219 = vpop.f32.mrb[0].mxu0
  %v220 = vadd.f32 0.0, %v219
  %v221 = vpop.f32.mrb[0].mxu0
  %222 = vmatprep.mubr.bf16.mxu0 0
  %223 = vmatmul.mubr.bf16.gmra.mrb[0].mxu0 %v84
  %v224 = vpop.f32.mrb[0].mxu0
  %v225 = vadd.f32 0.0, %v224
  %v226 = vpop.f32.mrb[0].mxu0
  %v227 = vpop.f32.mrb[0].mxu0
  %v228 = vadd.f32 0.0, %v227
  %v229 = vpop.f32.mrb[0].mxu0
  %230 = vmatprep.mubr.bf16.mxu0 0
  %231 = vmatmul.mubr.bf16.gmra.mrb[0].mxu0 %v85
  %v232 = vpop.f32.mrb[0].mxu0
  %v233 = vadd.f32 0.0, %v232
  %v234 = vpop.f32.mrb[0].mxu0
  %v235 = vpop.f32.mrb[0].mxu0
  %v236 = vadd.f32 0.0, %v235
  %v237 = vpop.f32.mrb[0].mxu0
  %238 = vdwg.mxu0
  %v239 = vpack.c.bf16 %v180, %v177
  %v240 = vpack.c.bf16 %v188, %v185
  %v241 = vpack.c.bf16 %v196, %v193
  %v242 = vpack.c.bf16 %v204, %v201
  %v243 = vpack.c.bf16 %v212, %v209
  %v244 = vpack.c.bf16 %v220, %v217
  %v245 = vpack.c.bf16 %v228, %v225
  %v246 = vpack.c.bf16 %v236, %v233
  %v255 = vunpack.c.l.b16 %v239
  %v256 = vunpack.c.h.b16 %v239
  %v257 = vunpack.c.l.b16 %v240
  %v258 = vunpack.c.h.b16 %v240
  %v259 = vunpack.c.l.b16 %v241
  %v260 = vunpack.c.h.b16 %v241
  %v261 = vunpack.c.l.b16 %v242
  %v262 = vunpack.c.h.b16 %v242
  %v263 = vunpack.c.l.b16 %v243
  %v264 = vunpack.c.h.b16 %v243
  %v265 = vunpack.c.l.b16 %v244
  %v266 = vunpack.c.h.b16 %v244
  %v267 = vunpack.c.l.b16 %v245
  %v268 = vunpack.c.h.b16 %v245
  %v269 = vunpack.c.l.b16 %v246
  %v270 = vunpack.c.h.b16 %v246
  %v271 = vpack.c.b16 %v255, %v255
  %v272 = vpack.c.b16 %v256, %v256
  %v273 = vpack.c.b16 %v257, %v257
  %v274 = vpack.c.b16 %v258, %v258
  %v275 = vpack.c.b16 %v259, %v259
  %v276 = vpack.c.b16 %v260, %v260
  %v277 = vpack.c.b16 %v261, %v261
  %v278 = vpack.c.b16 %v262, %v262
  %v279 = vpack.c.b16 %v263, %v263
  %v280 = vpack.c.b16 %v264, %v264
  %v281 = vpack.c.b16 %v265, %v265
  %v282 = vpack.c.b16 %v266, %v266
  %v283 = vpack.c.b16 %v267, %v267
  %v284 = vpack.c.b16 %v268, %v268
  %v285 = vpack.c.b16 %v269, %v269
  %v286 = vpack.c.b16 %v270, %v270
  %303 = vst [vmem:[%s2] sm:$0xf] %v271
  %304 = vst [vmem:[%s2 + $0x4] sm:$0xf] %v272
  %305 = vst [vmem:[%s2 + $0x8] sm:$0xf] %v273
  %306 = vst [vmem:[%s2 + $0xc] sm:$0xf] %v274
  %307 = vst [vmem:[%s2 + $0x10] sm:$0xf] %v275
  %308 = vst [vmem:[%s2 + $0x14] sm:$0xf] %v276
  %309 = vst [vmem:[%s2 + $0x18] sm:$0xf] %v277
  %310 = vst [vmem:[%s2 + $0x1c] sm:$0xf] %v278
  %311 = vst [vmem:[%s2 + $0x20] sm:$0xf] %v279
  %312 = vst [vmem:[%s2 + $0x24] sm:$0xf] %v280
  %313 = vst [vmem:[%s2 + $0x28] sm:$0xf] %v281
  %314 = vst [vmem:[%s2 + $0x2c] sm:$0xf] %v282
  %315 = vst [vmem:[%s2 + $0x30] sm:$0xf] %v283
  %316 = vst [vmem:[%s2 + $0x34] sm:$0xf] %v284
  %317 = vst [vmem:[%s2 + $0x38] sm:$0xf] %v285
  %318 = vst [vmem:[%s2 + $0x3c] sm:$0xf] %v286
  %v319 = vadd.f32 %v177, %v180
  %v320 = vadd.f32 %v319, %v185
  %v321 = vadd.f32 %v320, %v188
  %v322 = vadd.f32 %v321, %v193
  %v323 = vadd.f32 %v322, %v196
  %v324 = vadd.f32 %v323, %v201
  %v325 = vadd.f32 %v324, %v204
  %v326 = vadd.f32 %v325, %v209
  %v327 = vadd.f32 %v326, %v212
  %v328 = vadd.f32 %v327, %v217
  %v329 = vadd.f32 %v328, %v220
  %v330 = vadd.f32 %v329, %v225
  %v331 = vadd.f32 %v330, %v228
  %v332 = vadd.f32 %v331, %v233
  %v333 = vadd.f32 %v332, %v236
  %v334 = vrot.slane %v333, 4
  %v335 = vadd.f32 %v333, %v334
  %v336 = vrot.slane %v335, 2
  %v337 = vadd.f32 %v335, %v336
  %v338 = vrot.slane %v337, 1
  %v339 = vadd.f32 %v337, %v338
  %v340 = vmul.f32 %v177, %v177
  %v341 = vmul.f32 %v180, %v180
  %v342 = vmul.f32 %v185, %v185
  %v343 = vmul.f32 %v188, %v188
  %v344 = vmul.f32 %v193, %v193
  %v345 = vmul.f32 %v196, %v196
  %v346 = vmul.f32 %v201, %v201
  %v347 = vmul.f32 %v204, %v204
  %v348 = vmul.f32 %v209, %v209
  %v349 = vmul.f32 %v212, %v212
  %v350 = vmul.f32 %v217, %v217
  %v351 = vmul.f32 %v220, %v220
  %v352 = vmul.f32 %v225, %v225
  %v353 = vmul.f32 %v228, %v228
  %v354 = vmul.f32 %v233, %v233
  %v355 = vmul.f32 %v236, %v236
  %v356 = vadd.f32 %v340, %v341
  %v357 = vadd.f32 %v356, %v342
  %v358 = vadd.f32 %v357, %v343
  %v359 = vadd.f32 %v358, %v344
  %v360 = vadd.f32 %v359, %v345
  %v361 = vadd.f32 %v360, %v346
  %v362 = vadd.f32 %v361, %v347
  %v363 = vadd.f32 %v362, %v348
  %v364 = vadd.f32 %v363, %v349
  %v365 = vadd.f32 %v364, %v350
  %v366 = vadd.f32 %v365, %v351
  %v367 = vadd.f32 %v366, %v352
  %v368 = vadd.f32 %v367, %v353
  %v369 = vadd.f32 %v368, %v354
  %v370 = vadd.f32 %v369, %v355
  %v371 = vrot.slane %v370, 4
  %v372 = vadd.f32 %v370, %v371
  %v373 = vrot.slane %v372, 2
  %v374 = vadd.f32 %v372, %v373
  %v375 = vrot.slane %v374, 1
  %v376 = vadd.f32 %v374, %v375
  %v377 = vlaneseq
  %v378 = vshrl.u32 %v377, 7
  %vm379 = vcmp.eq.s32.totalorder %v378, 0
  %v380 = vsel %vm379, %v339, 0.0
  %vm381 = vcmp.eq.s32.totalorder %v378, 1
  %v382 = vsel %vm381, %v376, 0.0
  %v383 = vadd.f32 %v380, %v382
  %384 = vst [vmem:[%s3] sm:$0xff] %v383
  // Predicated region
  $region10: #{a_call__.6} parent=0 // pred_check
    _
  $region11: #{a_call__.6} parent=0 // pred_check_branch
    %386 = sbr.rel (0) target = $region13
  $region12: #{a_call__.6} parent=0 // pred_region
    _
  $region13: #{a_call__.6} parent=0 // pred_fallthru
    _
  // Predicated region
  $region14: #{a_call__.6} parent=0 // pred_check
    _
  $region15: #{a_call__.6} parent=0 // pred_check_branch
    %388 = sbr.rel (0) target = $region17
  $region16: #{a_call__.6} parent=0 // pred_region
    _
  $region17: #{a_call__.6} parent=0 // pred_fallthru
    _
  // Predicated region
  $region18: #{a_call__.6} parent=0 // pred_check
    _
  $region19: #{a_call__.6} parent=0 // pred_check_branch
    %390 = sbr.rel (0) target = $region21
  $region20: #{a_call__.6} parent=0 // pred_region
    _
  $region21: #{a_call__.6} parent=0 // pred_fallthru
    _
  // Predicated region
  $region22: #{a_call__.6} parent=0 // pred_check
    _
  $region23: #{a_call__.6} parent=0 // pred_check_branch
    %392 = sbr.rel (0) target = $region25
  $region24: #{a_call__.6} parent=0 // pred_region
    _
  $region25: #{a_call__.6} parent=0 // pred_fallthru
    _

// kernel: a_call__.7
$region0: #{a_call__.7}
  #allocation0 [shape = 'u32[]', space=smem, size = 0x4, offset = 0x4, fixed_abs, tag = 'smem constant byte address 0x4 - core index']
  #allocation1 [shape = 'u32[144,128]{1,0:T(1,128)}', space=vmem, size = 0x12000, scoped, tag = 'internal scratch']
  %s0 = inlined_call_operand.vmem [shape: bf16[128,128], index: 0, kind: input, shape index: {}]
  %s1 = inlined_call_operand.vmem [shape: f32[8,128], index: 1, kind: input, shape index: {}]
  %s2 = inlined_call_operand.vmem [shape: f32[1,128], index: 2, kind: input, shape index: {}, may-alias: {2,6}]
  %s3 = inlined_call_operand.vmem [shape: f32[1,128], index: 3, kind: input, shape index: {}, may-alias: {3,7}]
  %s4 = inlined_call_operand.vmem [shape: bf16[128,256], index: 4, kind: input, shape index: {}]
  %s5 = inlined_call_operand.vmem [shape: f32[8,128], index: 5, kind: input, shape index: {}]
  %s6 = inlined_call_operand.vmem [shape: f32[1,128], index: 6, kind: input, shape index: {}, may-alias: {2,6}]
  %s7 = inlined_call_operand.vmem [shape: f32[1,128], index: 7, kind: input, shape index: {}, may-alias: {3,7}]
  %s8 = inlined_call_operand.vmem [shape: f32[128,128], index: 8, kind: output, shape index: {}]
  %s9 = sld [smem:[#allocation0]]
  $region83: #{a_call__.7} parent=0
    _
  %s11 = ssub.s32 1, %s9
  %s12 = scalar_select 0, %s11, %s9
  $region1: #{a_call__.7} parent=0
    #allocation2 [shape = 'u8[32768]{0}', space=vmem, size = 0x8000, scoped, tag = 'input window, operand 4, single buffered']
    // Predicated region
    $region2: #{a_call__.7} parent=1 // pred_check
      _
    $region3: #{a_call__.7} parent=1 // pred_check_branch
      %14 = sbr.rel (0) target = $region5
    $region4: #{a_call__.7} parent=1 // pred_region
      _
    $region5: #{a_call__.7} parent=1 // pred_fallthru
      _
    // Predicated region
    $region6: #{a_call__.7} parent=1 // pred_check
      _
    $region7: #{a_call__.7} parent=1 // pred_check_branch
      %16 = sbr.rel (0) target = $region9
    $region8: #{a_call__.7} parent=1 // pred_region
      _
    $region9: #{a_call__.7} parent=1 // pred_fallthru
      _
    // Predicated region
    $region10: #{a_call__.7} parent=1 // pred_check
      _
    $region11: #{a_call__.7} parent=1 // pred_check_branch
      %18 = sbr.rel (0) target = $region13
    $region12: #{a_call__.7} parent=1 // pred_region
      _
    $region13: #{a_call__.7} parent=1 // pred_fallthru
      _
    // Predicated region
    $region14: #{a_call__.7} parent=1 // pred_check
      _
    $region15: #{a_call__.7} parent=1 // pred_check_branch
      %20 = sbr.rel (0) target = $region17
    $region16: #{a_call__.7} parent=1 // pred_region
      _
    $region17: #{a_call__.7} parent=1 // pred_fallthru
      _
    // Predicated region
    $region18: #{a_call__.7} parent=1 // pred_check
      _
    $region19: #{a_call__.7} parent=1 // pred_check_branch
      %22 = sbr.rel (0) target = $region21
    $region20: #{a_call__.7} parent=1 // pred_region
      %s23 = scalar_lea.vmem %s4, 4
      // Predicated region
      $region22: #{a_call__.7} parent=20 // pred_check
        _
      $region23: #{a_call__.7} parent=20 // pred_check_branch
        %25 = sbr.rel (0) target = $region25
      $region24: #{a_call__.7} parent=20 // pred_region
        // Predicated region
        $region26: #{a_call__.7} parent=24 // pred_check
          _
        $region27: #{a_call__.7} parent=24 // pred_check_branch
          %27 = sbr.rel target = $region29
        $region28: #{a_call__.7} parent=24 // pred_region
          // Predicated region
          $region41: #{a_call__.7} parent=28 // pred_check
            _
          $region42: #{a_call__.7} parent=28 // pred_check_branch
            %72 = sbr.rel (0) target = $region44
          $region43: #{a_call__.7} parent=28 // pred_region
            loop: start=0, step=1, limit=1
            $region45: #{a_call__.7} parent=43 // loop_pre_header
              _
            $region46: #{a_call__.7} parent=43 // loop_header
              %s74 = sphi 0, %s78
              %p75 = scmp.ge.s32.totalorder %s74, 1
              %s79 = sphi %s23, %s23
              %s80 = sphi [#allocation2], [#allocation2]
            $region47: #{a_call__.7} parent=43 // loop_header_branch
              %77 = sbr.rel (%p75) target = $region51
            $region48: #{a_call__.7} parent=43 // loop_body
              _
            $region49: #{a_call__.7} parent=43 // loop_footer
              %s78 = sadd.s32 1, %s74
            $region50: #{a_call__.7} parent=43 // loop_footer_branch
              %73 = sbr.rel target = $region46
            $region51: #{a_call__.7} parent=43 // loop_exit
              _
            loop: start=0, step=1, limit=1
            $region52: #{a_call__.7} parent=43 // loop_pre_header
              _
            $region53: #{a_call__.7} parent=43 // loop_header
              %s83 = sphi 0, %s87
              %p84 = scmp.ge.s32.totalorder %s83, 1
              %s88 = sphi %s23, %s23
              %s89 = sphi [#allocation2], [#allocation2]
            $region54: #{a_call__.7} parent=43 // loop_header_branch
              %86 = sbr.rel (%p84) target = $region58
            $region55: #{a_call__.7} parent=43 // loop_body
              %v90 = vld [vmem:[%s88] sm:$0xf]
              %91 = vst [vmem:[%s89] sm:$0xf] %v90
              %v92 = vld [vmem:[%s88 + $0x8] sm:$0xf]
              %93 = vst [vmem:[%s89 + $0x4] sm:$0xf] %v92
              %v94 = vld [vmem:[%s88 + $0x10] sm:$0xf]
              %95 = vst [vmem:[%s89 + $0x8] sm:$0xf] %v94
              %v96 = vld [vmem:[%s88 + $0x18] sm:$0xf]
              %97 = vst [vmem:[%s89 + $0xc] sm:$0xf] %v96
              %v98 = vld [vmem:[%s88 + $0x20] sm:$0xf]
              %99 = vst [vmem:[%s89 + $0x10] sm:$0xf] %v98
              %v100 = vld [vmem:[%s88 + $0x28] sm:$0xf]
              %101 = vst [vmem:[%s89 + $0x14] sm:$0xf] %v100
              %v102 = vld [vmem:[%s88 + $0x30] sm:$0xf]
              %103 = vst [vmem:[%s89 + $0x18] sm:$0xf] %v102
              %v104 = vld [vmem:[%s88 + $0x38] sm:$0xf]
              %105 = vst [vmem:[%s89 + $0x1c] sm:$0xf] %v104
              %v106 = vld [vmem:[%s88 + $0x40] sm:$0xf]
              %107 = vst [vmem:[%s89 + $0x20] sm:$0xf] %v106
              %v108 = vld [vmem:[%s88 + $0x48] sm:$0xf]
              %109 = vst [vmem:[%s89 + $0x24] sm:$0xf] %v108
              %v110 = vld [vmem:[%s88 + $0x50] sm:$0xf]
              %111 = vst [vmem:[%s89 + $0x28] sm:$0xf] %v110
              %v112 = vld [vmem:[%s88 + $0x58] sm:$0xf]
              %113 = vst [vmem:[%s89 + $0x2c] sm:$0xf] %v112
              %v114 = vld [vmem:[%s88 + $0x60] sm:$0xf]
              %115 = vst [vmem:[%s89 + $0x30] sm:$0xf] %v114
              %v116 = vld [vmem:[%s88 + $0x68] sm:$0xf]
              %117 = vst [vmem:[%s89 + $0x34] sm:$0xf] %v116
              %v118 = vld [vmem:[%s88 + $0x70] sm:$0xf]
              %119 = vst [vmem:[%s89 + $0x38] sm:$0xf] %v118
              %v120 = vld [vmem:[%s88 + $0x78] sm:$0xf]
              %121 = vst [vmem:[%s89 + $0x3c] sm:$0xf] %v120
            $region56: #{a_call__.7} parent=43 // loop_footer
              %s87 = sadd.s32 1, %s83
            $region57: #{a_call__.7} parent=43 // loop_footer_branch
              %82 = sbr.rel target = $region53
            $region58: #{a_call__.7} parent=43 // loop_exit
              _
          $region44: #{a_call__.7} parent=28 // pred_fallthru
            _
        $region29: #{a_call__.7} parent=24 // pred_fallthru
          _
        // Predicated region
        $region30: #{a_call__.7} parent=24 // pred_check
          _
        $region31: #{a_call__.7} parent=24 // pred_check_branch
          %29 = sbr.rel (0) target = $region33
        $region32: #{a_call__.7} parent=24 // pred_region
          loop: start=0, step=1, limit=1
          $region34: #{a_call__.7} parent=32 // loop_pre_header
            _
          $region35: #{a_call__.7} parent=32 // loop_header
            %s32 = sphi 0, %s36
            %p33 = scmp.ge.s32.totalorder %s32, 1
            %s37 = sphi %s23, %s23
            %s38 = sphi [#allocation2], [#allocation2]
          $region36: #{a_call__.7} parent=32 // loop_header_branch
            %35 = sbr.rel (%p33) target = $region40
          $region37: #{a_call__.7} parent=32 // loop_body
            %v39 = vld [vmem:[%s37] sm:$0xf]
            %40 = vst [vmem:[%s38] sm:$0xf] %v39
            %v41 = vld [vmem:[%s37 + $0x8] sm:$0xf]
            %42 = vst [vmem:[%s38 + $0x4] sm:$0xf] %v41
            %v43 = vld [vmem:[%s37 + $0x10] sm:$0xf]
            %44 = vst [vmem:[%s38 + $0x8] sm:$0xf] %v43
            %v45 = vld [vmem:[%s37 + $0x18] sm:$0xf]
            %46 = vst [vmem:[%s38 + $0xc] sm:$0xf] %v45
            %v47 = vld [vmem:[%s37 + $0x20] sm:$0xf]
            %48 = vst [vmem:[%s38 + $0x10] sm:$0xf] %v47
            %v49 = vld [vmem:[%s37 + $0x28] sm:$0xf]
            %50 = vst [vmem:[%s38 + $0x14] sm:$0xf] %v49
            %v51 = vld [vmem:[%s37 + $0x30] sm:$0xf]
            %52 = vst [vmem:[%s38 + $0x18] sm:$0xf] %v51
            %v53 = vld [vmem:[%s37 + $0x38] sm:$0xf]
            %54 = vst [vmem:[%s38 + $0x1c] sm:$0xf] %v53
            %v55 = vld [vmem:[%s37 + $0x40] sm:$0xf]
            %56 = vst [vmem:[%s38 + $0x20] sm:$0xf] %v55
            %v57 = vld [vmem:[%s37 + $0x48] sm:$0xf]
            %58 = vst [vmem:[%s38 + $0x24] sm:$0xf] %v57
            %v59 = vld [vmem:[%s37 + $0x50] sm:$0xf]
            %60 = vst [vmem:[%s38 + $0x28] sm:$0xf] %v59
            %v61 = vld [vmem:[%s37 + $0x58] sm:$0xf]
            %62 = vst [vmem:[%s38 + $0x2c] sm:$0xf] %v61
            %v63 = vld [vmem:[%s37 + $0x60] sm:$0xf]
            %64 = vst [vmem:[%s38 + $0x30] sm:$0xf] %v63
            %v65 = vld [vmem:[%s37 + $0x68] sm:$0xf]
            %66 = vst [vmem:[%s38 + $0x34] sm:$0xf] %v65
            %v67 = vld [vmem:[%s37 + $0x70] sm:$0xf]
            %68 = vst [vmem:[%s38 + $0x38] sm:$0xf] %v67
            %v69 = vld [vmem:[%s37 + $0x78] sm:$0xf]
            %70 = vst [vmem:[%s38 + $0x3c] sm:$0xf] %v69
          $region38: #{a_call__.7} parent=32 // loop_footer
            %s36 = sadd.s32 1, %s32
          $region39: #{a_call__.7} parent=32 // loop_footer_branch
            %31 = sbr.rel target = $region35
          $region40: #{a_call__.7} parent=32 // loop_exit
            _
        $region33: #{a_call__.7} parent=24 // pred_fallthru
          _
      $region25: #{a_call__.7} parent=20 // pred_fallthru
        _
      %122 = vnop
    $region21: #{a_call__.7} parent=1 // pred_fallthru
      _
    // Predicated region
    $region59: #{a_call__.7} parent=1 // pred_check
      _
    $region60: #{a_call__.7} parent=1 // pred_check_branch
      %124 = sbr.rel (0) target = $region62
    $region61: #{a_call__.7} parent=1 // pred_region
      _
    $region62: #{a_call__.7} parent=1 // pred_fallthru
      _
    // Predicated region
    $region63: #{a_call__.7} parent=1 // pred_check
      _
    $region64: #{a_call__.7} parent=1 // pred_check_branch
      %126 = sbr.rel (0) target = $region66
    $region65: #{a_call__.7} parent=1 // pred_region
      _
    $region66: #{a_call__.7} parent=1 // pred_fallthru
      _
    // Predicated region
    $region67: #{a_call__.7} parent=1 // pred_check
      _
    $region68: #{a_call__.7} parent=1 // pred_check_branch
      %128 = sbr.rel (0) target = $region70
    $region69: #{a_call__.7} parent=1 // pred_region
      _
    $region70: #{a_call__.7} parent=1 // pred_fallthru
      _
    // Predicated region
    $region71: #{a_call__.7} parent=1 // pred_check
      _
    $region72: #{a_call__.7} parent=1 // pred_check_branch
      %130 = sbr.rel (0) target = $region74
    $region73: #{a_call__.7} parent=1 // pred_region
      _
    $region74: #{a_call__.7} parent=1 // pred_fallthru
      _
    %v131 = vld [vmem:[%s1] sm:$0xff]
    %v132 = vld [vmem:[%s2] sm:$0x1]
    %v133 = vld [vmem:[%s3] sm:$0x1]
    %v134 = vmul.f32 %v131, 0.0078125
    %v135 = vmul.f32 %v134, %v134
    %v137 = vrot.slane %v135, 7
    %v139 = vsub.f32 %v134, %v137
    %v140 = vmax.f32 %v139, 0.0
    %v141 = vadd.f32 %v140, 1e-05
    %v142 = vrsqrt.pop %v141
    %v145 = vunpack.c.l.s4 1966171168
    %v146 = vunpack.c.0.s8 %v145
    %v147 = vlaneseq
    %v148 = vshrl.u32 %v147, 7
    %v149 = vsub.s32 %v146, %v148
    %v150 = vrot.slane %v142, %v149
    %v151 = vcombine.high %v150, %v150
    %v153 = vunpack.c.l.s4 1966171168
    %v154 = vunpack.c.0.s8 %v153
    %v155 = vlaneseq
    %v156 = vshrl.u32 %v155, 7
    %v157 = vsub.s32 %v154, %v156
    %v158 = vrot.slane %v151, %v157
    %v160 = vmul.f32 %v132, %v158
    %v161 = vmul.f32 %v134, %v160
    %v162 = vsub.f32 %v133, %v161
    %v163 = vld [vmem:[%s5] sm:$0xff]
    %v164 = vld [vmem:[%s6] sm:$0x1]
    %v165 = vld [vmem:[%s7] sm:$0x1]
    %v166 = vmul.f32 %v163, 0.0078125
    %v167 = vmul.f32 %v166, %v166
    %v169 = vrot.slane %v167, 7
    %v171 = vsub.f32 %v166, %v169
    %v172 = vmax.f32 %v171, 0.0
    %v173 = vadd.f32 %v172, 1e-05
    %v174 = vrsqrt.pop %v173
    %v177 = vunpack.c.l.s4 1966171168
    %v178 = vunpack.c.0.s8 %v177
    %v179 = vlaneseq
    %v180 = vshrl.u32 %v179, 7
    %v181 = vsub.s32 %v178, %v180
    %v182 = vrot.slane %v174, %v181
    %v183 = vcombine.high %v182, %v182
    %v185 = vunpack.c.l.s4 1966171168
    %v186 = vunpack.c.0.s8 %v185
    %v187 = vlaneseq
    %v188 = vshrl.u32 %v187, 7
    %v189 = vsub.s32 %v186, %v188
    %v190 = vrot.slane %v183, %v189
    %v192 = vmul.f32 %v164, %v190
    %v193 = vmul.f32 %v166, %v192
    %v194 = vsub.f32 %v165, %v193
    %v195 = vld [vmem:[%s0] sm:$0xf]
    %v196 = vld [vmem:[%s0 + $0x4] sm:$0xf]
    %v197 = vld [vmem:[%s0 + $0x8] sm:$0xf]
    %v198 = vld [vmem:[%s0 + $0xc] sm:$0xf]
    %v199 = vld [vmem:[%s0 + $0x10] sm:$0xf]
    %v200 = vld [vmem:[%s0 + $0x14] sm:$0xf]
    %v201 = vld [vmem:[%s0 + $0x18] sm:$0xf]
    %v202 = vld [vmem:[%s0 + $0x1c] sm:$0xf]
    %v203 = vld [vmem:[%s0 + $0x20] sm:$0xf]
    %v204 = vld [vmem:[%s0 + $0x24] sm:$0xf]
    %v205 = vld [vmem:[%s0 + $0x28] sm:$0xf]
    %v206 = vld [vmem:[%s0 + $0x2c] sm:$0xf]
    %v207 = vld [vmem:[%s0 + $0x30] sm:$0xf]
    %v208 = vld [vmem:[%s0 + $0x34] sm:$0xf]
    %v209 = vld [vmem:[%s0 + $0x38] sm:$0xf]
    %v210 = vld [vmem:[%s0 + $0x3c] sm:$0xf]
    %v211 = vunpack.c.l.bf16 %v195
    %v212 = vunpack.c.l.bf16 %v196
    %v213 = vunpack.c.l.bf16 %v197
    %v214 = vunpack.c.l.bf16 %v198
    %v215 = vunpack.c.l.bf16 %v199
    %v216 = vunpack.c.l.bf16 %v200
    %v217 = vunpack.c.l.bf16 %v201
    %v218 = vunpack.c.l.bf16 %v202
    %v219 = vunpack.c.l.bf16 %v203
    %v220 = vunpack.c.l.bf16 %v204
    %v221 = vunpack.c.l.bf16 %v205
    %v222 = vunpack.c.l.bf16 %v206
    %v223 = vunpack.c.l.bf16 %v207
    %v224 = vunpack.c.l.bf16 %v208
    %v225 = vunpack.c.l.bf16 %v209
    %v226 = vunpack.c.l.bf16 %v210
    %v228 = vlaneseq
    %v229 = vshrl.u32 %v228, 7
    %v230 = vsub.s32 0, %v229
    %v231 = vrot.slane %v160, %v230
    %v233 = vmul.f32 %v211, %v231
    %v234 = vmul.f32 %v212, %v231
    %v235 = vmul.f32 %v213, %v231
    %v236 = vmul.f32 %v214, %v231
    %v237 = vmul.f32 %v215, %v231
    %v238 = vmul.f32 %v216, %v231
    %v239 = vmul.f32 %v217, %v231
    %v240 = vmul.f32 %v218, %v231
    %v241 = vmul.f32 %v219, %v231
    %v242 = vmul.f32 %v220, %v231
    %v243 = vmul.f32 %v221, %v231
    %v244 = vmul.f32 %v222, %v231
    %v245 = vmul.f32 %v223, %v231
    %v246 = vmul.f32 %v224, %v231
    %v247 = vmul.f32 %v225, %v231
    %v248 = vmul.f32 %v226, %v231
    %v250 = vlaneseq
    %v251 = vshrl.u32 %v250, 7
    %v252 = vsub.s32 0, %v251
    %v253 = vrot.slane %v162, %v252
    %v255 = vadd.f32 %v233, %v253
    %v256 = vadd.f32 %v234, %v253
    %v257 = vadd.f32 %v235, %v253
    %v258 = vadd.f32 %v236, %v253
    %v259 = vadd.f32 %v237, %v253
    %v260 = vadd.f32 %v238, %v253
    %v261 = vadd.f32 %v239, %v253
    %v262 = vadd.f32 %v240, %v253
    %v263 = vadd.f32 %v241, %v253
    %v264 = vadd.f32 %v242, %v253
    %v265 = vadd.f32 %v243, %v253
    %v266 = vadd.f32 %v244, %v253
    %v267 = vadd.f32 %v245, %v253
    %v268 = vadd.f32 %v246, %v253
    %v269 = vadd.f32 %v247, %v253
    %v270 = vadd.f32 %v248, %v253
    %v271 = vld [vmem:[#allocation2] sm:$0xf]
    %v272 = vld [vmem:[#allocation2 + $0x4] sm:$0xf]
    %v273 = vld [vmem:[#allocation2 + $0x8] sm:$0xf]
    %v274 = vld [vmem:[#allocation2 + $0xc] sm:$0xf]
    %v275 = vld [vmem:[#allocation2 + $0x10] sm:$0xf]
    %v276 = vld [vmem:[#allocation2 + $0x14] sm:$0xf]
    %v277 = vld [vmem:[#allocation2 + $0x18] sm:$0xf]
    %v278 = vld [vmem:[#allocation2 + $0x1c] sm:$0xf]
    %v279 = vld [vmem:[#allocation2 + $0x20] sm:$0xf]
    %v280 = vld [vmem:[#allocation2 + $0x24] sm:$0xf]
    %v281 = vld [vmem:[#allocation2 + $0x28] sm:$0xf]
    %v282 = vld [vmem:[#allocation2 + $0x2c] sm:$0xf]
    %v283 = vld [vmem:[#allocation2 + $0x30] sm:$0xf]
    %v284 = vld [vmem:[#allocation2 + $0x34] sm:$0xf]
    %v285 = vld [vmem:[#allocation2 + $0x38] sm:$0xf]
    %v286 = vld [vmem:[#allocation2 + $0x3c] sm:$0xf]
    %v287 = vunpack.c.l.bf16 %v271
    %v288 = vunpack.c.l.bf16 %v272
    %v289 = vunpack.c.l.bf16 %v273
    %v290 = vunpack.c.l.bf16 %v274
    %v291 = vunpack.c.l.bf16 %v275
    %v292 = vunpack.c.l.bf16 %v276
    %v293 = vunpack.c.l.bf16 %v277
    %v294 = vunpack.c.l.bf16 %v278
    %v295 = vunpack.c.l.bf16 %v279
    %v296 = vunpack.c.l.bf16 %v280
    %v297 = vunpack.c.l.bf16 %v281
    %v298 = vunpack.c.l.bf16 %v282
    %v299 = vunpack.c.l.bf16 %v283
    %v300 = vunpack.c.l.bf16 %v284
    %v301 = vunpack.c.l.bf16 %v285
    %v302 = vunpack.c.l.bf16 %v286
    %v304 = vlaneseq
    %v305 = vshrl.u32 %v304, 7
    %v306 = vsub.s32 0, %v305
    %v307 = vrot.slane %v192, %v306
    %v309 = vmul.f32 %v287, %v307
    %v310 = vmul.f32 %v288, %v307
    %v311 = vmul.f32 %v289, %v307
    %v312 = vmul.f32 %v290, %v307
    %v313 = vmul.f32 %v291, %v307
    %v314 = vmul.f32 %v292, %v307
    %v315 = vmul.f32 %v293, %v307
    %v316 = vmul.f32 %v294, %v307
    %v317 = vmul.f32 %v295, %v307
    %v318 = vmul.f32 %v296, %v307
    %v319 = vmul.f32 %v297, %v307
    %v320 = vmul.f32 %v298, %v307
    %v321 = vmul.f32 %v299, %v307
    %v322 = vmul.f32 %v300, %v307
    %v323 = vmul.f32 %v301, %v307
    %v324 = vmul.f32 %v302, %v307
    %v326 = vlaneseq
    %v327 = vshrl.u32 %v326, 7
    %v328 = vsub.s32 0, %v327
    %v329 = vrot.slane %v194, %v328
    %v331 = vadd.f32 %v309, %v329
    %v332 = vadd.f32 %v310, %v329
    %v333 = vadd.f32 %v311, %v329
    %v334 = vadd.f32 %v312, %v329
    %v335 = vadd.f32 %v313, %v329
    %v336 = vadd.f32 %v314, %v329
    %v337 = vadd.f32 %v315, %v329
    %v338 = vadd.f32 %v316, %v329
    %v339 = vadd.f32 %v317, %v329
    %v340 = vadd.f32 %v318, %v329
    %v341 = vadd.f32 %v319, %v329
    %v342 = vadd.f32 %v320, %v329
    %v343 = vadd.f32 %v321, %v329
    %v344 = vadd.f32 %v322, %v329
    %v345 = vadd.f32 %v323, %v329
    %v346 = vadd.f32 %v324, %v329
    %v347 = vadd.f32 %v255, %v331
    %v348 = vadd.f32 %v256, %v332
    %v349 = vadd.f32 %v257, %v333
    %v350 = vadd.f32 %v258, %v334
    %v351 = vadd.f32 %v259, %v335
    %v352 = vadd.f32 %v260, %v336
    %v353 = vadd.f32 %v261, %v337
    %v354 = vadd.f32 %v262, %v338
    %v355 = vadd.f32 %v263, %v339
    %v356 = vadd.f32 %v264, %v340
    %v357 = vadd.f32 %v265, %v341
    %v358 = vadd.f32 %v266, %v342
    %v359 = vadd.f32 %v267, %v343
    %v360 = vadd.f32 %v268, %v344
    %v361 = vadd.f32 %v269, %v345
    %v362 = vadd.f32 %v270, %v346
    %v363 = vmax.f32 %v347, 0.0
    %v364 = vmax.f32 %v348, 0.0
    %v365 = vmax.f32 %v349, 0.0
    %v366 = vmax.f32 %v350, 0.0
    %v367 = vmax.f32 %v351, 0.0
    %v368 = vmax.f32 %v352, 0.0
    %v369 = vmax.f32 %v353, 0.0
    %v370 = vmax.f32 %v354, 0.0
    %v371 = vmax.f32 %v355, 0.0
    %v372 = vmax.f32 %v356, 0.0
    %v373 = vmax.f32 %v357, 0.0
    %v374 = vmax.f32 %v358, 0.0
    %v375 = vmax.f32 %v359, 0.0
    %v376 = vmax.f32 %v360, 0.0
    %v377 = vmax.f32 %v361, 0.0
    %v378 = vmax.f32 %v362, 0.0
    %379 = vst [vmem:[%s8] sm:$0xff] %v363
    %380 = vst [vmem:[%s8 + $0x8] sm:$0xff] %v364
    %381 = vst [vmem:[%s8 + $0x10] sm:$0xff] %v365
    %382 = vst [vmem:[%s8 + $0x18] sm:$0xff] %v366
    %383 = vst [vmem:[%s8 + $0x20] sm:$0xff] %v367
    %384 = vst [vmem:[%s8 + $0x28] sm:$0xff] %v368
    %385 = vst [vmem:[%s8 + $0x30] sm:$0xff] %v369
    %386 = vst [vmem:[%s8 + $0x38] sm:$0xff] %v370
    %387 = vst [vmem:[%s8 + $0x40] sm:$0xff] %v371
    %388 = vst [vmem:[%s8 + $0x48] sm:$0xff] %v372
    %389 = vst [vmem:[%s8 + $0x50] sm:$0xff] %v373
    %390 = vst [vmem:[%s8 + $0x58] sm:$0xff] %v374
    %391 = vst [vmem:[%s8 + $0x60] sm:$0xff] %v375
    %392 = vst [vmem:[%s8 + $0x68] sm:$0xff] %v376
    %393 = vst [vmem:[%s8 + $0x70] sm:$0xff] %v377
    %394 = vst [vmem:[%s8 + $0x78] sm:$0xff] %v378
    // Predicated region
    $region75: #{a_call__.7} parent=1 // pred_check
      _
    $region76: #{a_call__.7} parent=1 // pred_check_branch
      %396 = sbr.rel (0) target = $region78
    $region77: #{a_call__.7} parent=1 // pred_region
      _
    $region78: #{a_call__.7} parent=1 // pred_fallthru
      _
    // Predicated region
    $region79: #{a_call__.7} parent=1 // pred_check
      _
    $region80: #{a_call__.7} parent=1 // pred_check_branch
      %398 = sbr.rel (0) target = $region82
    $region81: #{a_call__.7} parent=1 // pred_region
      _
    $region82: #{a_call__.7} parent=1 // pred_fallthru
      _

</llo_original>
